<compile_context>
chip_gen: v7x
topology: tpu7x:2x2x1
jax: 0.10.0
libtpu: 0.0.40
codegen_flags: <defaults>
</compile_context>

<pallas_src>
import functools

import jax
import jax.numpy as jnp
from jax.experimental import pallas as pl
from jax.experimental.pallas import tpu as pltpu

_KH = _KW = 3     # ConvBlock defaults: kernel_size=3, stride=1, padding=1
_LANE = 128
_CT = 128         # Cout tile (one lane-tile of output channels per grid step)


def _round_up(x, m):
    return ((x + m - 1) // m) * m


# ----------------------------- Pallas kernels ------------------------------ #

def _conv_tile(x_ref, mask_ref, w_ref, xf_ref, W):
    """Conv of one image tile for one Cout tile, as a single deep matmul.

    x_ref   : (1, Cin, H*W)   flat NCHW image tile (VMEM)
    mask_ref: (2, H*W)        f32 keep-masks for the kw=0 / kw=2 taps
    w_ref   : (CT, 9*Cin)     weights, output channels on sublanes (MXU LHS)
    xf_ref  : (Cin, Lf)       VMEM scratch: flat copy of the tile with H-padding
    returns : (CT, H*W) f32   conv output tile, already in (C, H*W) orientation
    """
    Cin, HW = x_ref.shape[1], x_ref.shape[2]
    Lf = xf_ref.shape[1]
    lead = Lf - HW - W - 1          # 128-aligned leading zero region
    off0 = lead - W - 1             # flat source offset of tap (kh=0, kw=0)

    # In-kernel zero padding (fuses the spatial pad; host never pads).
    xf_ref[:, 0:lead] = jnp.zeros((Cin, lead), xf_ref.dtype)
    xf_ref[:, lead + HW:Lf] = jnp.zeros((Cin, Lf - lead - HW), xf_ref.dtype)
    xf_ref[:, lead:lead + HW] = x_ref[0]            # lane-aligned bulk store

    m_left = mask_ref[0:1, :]       # zero output column w == 0   (kw = 0 taps)
    m_right = mask_ref[1:2, :]      # zero output column w == W-1 (kw = 2 taps)

    # im2col built once per tile: each tap window is a contiguous lane-slice of
    # the flat padded scratch (no (H,W)->(H*W) reshape of a shifted window).
    wins = []
    for kh in range(_KH):
        for kw in range(_KW):
            win = xf_ref[:, off0 + kh * W + kw: off0 + kh * W + kw + HW]
            if kw == 0:
                win = win * m_left
            elif kw == 2:
                win = win * m_right
            wins.append(win)
    patches = jnp.concatenate(wins, axis=0)          # (9*Cin, H*W)

    # One deep matmul (K = 9*Cin), weights as LHS -> (CT, H*W), no transpose.
    return jnp.dot(w_ref[...], patches, preferred_element_type=jnp.float32)


def _stats_kernel(W, x_ref, mask_ref, w_ref, psum_ref, psq_ref, xf_ref):
    """Pass 1: per-(image, Cout-tile) partial channel sum / sum-of-squares."""
    acc = _conv_tile(x_ref, mask_ref, w_ref, xf_ref, W)      # (CT, H*W) f32
    psum_ref[0] = jnp.sum(acc, axis=1, keepdims=True)        # (CT, 1)
    psq_ref[0] = jnp.sum(acc * acc, axis=1, keepdims=True)


def _conv_bn_relu_kernel(W, x_ref, mask_ref, w_ref, shift_ref, out_ref, xf_ref):
    """Pass 2: conv (BN scale pre-folded into w) + shift + ReLU, lane-dense out."""
    acc = _conv_tile(x_ref, mask_ref, w_ref, xf_ref, W)      # (CT, H*W) f32
    out_ref[0] = jnp.maximum(acc + shift_ref[...], 0.0).astype(out_ref.dtype)


# ------------------------------ Host wrapper ------------------------------- #

@functools.partial(jax.jit, static_argnames=("eps",))
def conv_block_forward(x_nchw, w, b, gamma, beta, eps=1e-5):
    """ConvBlock forward: Conv2d(k=3,s=1,p=1) -> BatchNorm2d(train) -> ReLU."""
    N, Cin, H, W = x_nchw.shape
    Cout = w.shape[0]
    # Conv bias is exactly cancelled by training-mode BatchNorm (it only shifts
    # the batch mean).  Only valid when batch stats are used (not eval mode).
    del b

    HW = H * W
    Cout_pad = _round_up(Cout, _LANE)
    CT = _CT
    C_chunks = Cout_pad // CT

    lead = _round_up(W + 1, _LANE)       # leading zeros (top pad row + alignment)
    Lf = lead + HW + W + 1               # flat padded length per channel

    # Host glue is a FREE reshape only (no transpose pass, no pad pass).
    x_flat = x_nchw.reshape(N, Cin, HW).astype(jnp.float32)

    # Weights -> (Cout_pad, 9*Cin) with K ordered (kh, kw, cin), lane-padded Cout.
    w_lhs = jnp.transpose(w.astype(jnp.float32), (0, 2, 3, 1))
    w_lhs = w_lhs.reshape(Cout, _KH * _KW * Cin)
    w_lhs = jnp.pad(w_lhs, ((0, Cout_pad - Cout), (0, 0)))

    # Keep-masks implementing the left/right spatial padding for kw=0 / kw=2.
    col = jnp.arange(HW, dtype=jnp.int32) % W
    wmask = jnp.stack([
        (col != 0).astype(jnp.float32),          # kw = 0: zero output col w==0
        (col != (W - 1)).astype(jnp.float32),    # kw = 2: zero output col w==W-1
    ], axis=0)                                   # (2, H*W)

    grid = (N, C_chunks)
    cparams = pltpu.CompilerParams(
        dimension_semantics=("parallel", "parallel"),
        # above v5e's 16 MiB default; well under v7x's 64 MiB physical VMEM
        vmem_limit_bytes=48 * 1024 * 1024,
    )

    x_spec = pl.BlockSpec((1, Cin, HW), lambda n, c: (n, 0, 0))
    mask_spec = pl.BlockSpec((2, HW), lambda n, c: (0, 0))
    w_spec = pl.BlockSpec((CT, _KH * _KW * Cin), lambda n, c: (c, 0))
    scratch = [pltpu.VMEM((Cin, Lf), jnp.float32)]

    # ---- pass 1: partial channel statistics (fully parallel grid) ----
    psum, psq = pl.pallas_call(
        functools.partial(_stats_kernel, W),
        out_shape=(
            jax.ShapeDtypeStruct((N, Cout_pad, 1), jnp.float32),
            jax.ShapeDtypeStruct((N, Cout_pad, 1), jnp.float32),
        ),
        grid_spec=pltpu.PrefetchScalarGridSpec(
            num_scalar_prefetch=0,
            grid=grid,
            in_specs=[x_spec, mask_spec, w_spec],
            out_specs=(
                pl.BlockSpec((1, CT, 1), lambda n, c: (n, c, 0)),
                pl.BlockSpec((1, CT, 1), lambda n, c: (n, c, 0)),
            ),
            scratch_shapes=scratch,
        ),
        compiler_params=cparams,
    )(x_flat, wmask, w_lhs)

    # ---- tiny per-channel BN math in plain JAX ----
    M = N * HW
    mean = jnp.sum(psum[..., 0], axis=0) / M                  # (Cout_pad,)
    ex2 = jnp.sum(psq[..., 0], axis=0) / M
    var = jnp.maximum(ex2 - mean * mean, 0.0)  # clamp: single-pass variance
    gamma_pad = jnp.pad(gamma.astype(jnp.float32), (0, Cout_pad - Cout))
    beta_pad = jnp.pad(beta.astype(jnp.float32), (0, Cout_pad - Cout))
    scale = gamma_pad * jax.lax.rsqrt(var + eps)
    shift = (beta_pad - mean * scale).reshape(Cout_pad, 1)
    w_lhs_scaled = w_lhs * scale[:, None]      # fold BN scale into pass-2 weights

    # ---- pass 2: fused conv + BN shift + ReLU, (Cout_pad, H*W) output ----
    out = pl.pallas_call(
        functools.partial(_conv_bn_relu_kernel, W),
        out_shape=jax.ShapeDtypeStruct((N, Cout_pad, HW), jnp.float32),
        grid_spec=pltpu.PrefetchScalarGridSpec(
            num_scalar_prefetch=0,
            grid=grid,
            in_specs=[x_spec, mask_spec, w_spec,
                      pl.BlockSpec((CT, 1), lambda n, c: (c, 0))],
            out_specs=pl.BlockSpec((1, CT, HW), lambda n, c: (n, c, 0)),
            scratch_shapes=scratch,
        ),
        compiler_params=cparams,
    )(x_flat, wmask, w_lhs_scaled, shift)

    # Slice channel padding; (N, Cout, H*W) -> (N, Cout, H, W) is a free reshape.
    return out[:, :Cout, :].reshape(N, Cout, H, W)


# --------------------------- Pure-JAX reference ----------------------------- #

def _reference(x, w, b, gamma, beta, eps=1e-5):
    y = jax.lax.conv_general_dilated(
        x, w, window_strides=(1, 1), padding=((1, 1), (1, 1)),
        dimension_numbers=("NCHW", "OIHW", "NCHW"))
    y = y + b[None, :, None, None]
    mean = jnp.mean(y, axis=(0, 2, 3), keepdims=True)
    var = jnp.mean((y - mean) ** 2, axis=(0, 2, 3), keepdims=True)  # biased (train BN)
    y = (y - mean) / jnp.sqrt(var + eps)
    y = y * gamma[None, :, None, None] + beta[None, :, None, None]
    return jnp.maximum(y, 0.0)


# ---------------------------------- Main ------------------------------------ #

if __name__ == "__main__":
    # ConvBlock(chan_in=4, chan_out=8) on x: (N=2, C=4, H=16, W=16)
    N, Cin, H, W, Cout = 2, 4, 16, 16, 8

    key = jax.random.PRNGKey(0)
    kx, kw, kb, kg, kbe = jax.random.split(key, 5)

    x = jax.random.normal(kx, (N, Cin, H, W), dtype=jnp.float32)

    fan_in = Cin * 3 * 3
    bound = 1.0 / jnp.sqrt(fan_in)
    w = jax.random.uniform(kw, (Cout, Cin, 3, 3), jnp.float32, -bound, bound)
    b = jax.random.uniform(kb, (Cout,), jnp.float32, -bound, bound)
    gamma = 1.0 + 0.1 * jax.random.normal(kg, (Cout,), jnp.float32)
    beta = 0.1 * jax.random.normal(kbe, (Cout,), jnp.float32)

    out = conv_block_forward(x, w, b, gamma, beta)
    out = jax.block_until_ready(out)

    ref = _reference(x, w, b, gamma, beta)
    assert out.shape == (N, Cout, H, W)
    assert jnp.allclose(out, ref, rtol=1e-3, atol=1e-3), (
        "mismatch vs reference: max abs err "
        f"{float(jnp.max(jnp.abs(out - ref)))}")

    print("KERNEL_OK")
</pallas_src>

<mosaic_0001>
module attributes {stable_mosaic.version = 11 : i64} {
  func.func @_conv_bn_relu_kernel(%arg0: i32, %arg1: i32, %arg2: memref<1x4x256xf32, #tpu.memory_space<vmem>>, %arg3: memref<2x256xf32, #tpu.memory_space<vmem>>, %arg4: memref<128x36xf32, #tpu.memory_space<vmem>>, %arg5: memref<128x1xf32, #tpu.memory_space<vmem>>, %arg6: memref<1x128x256xf32, #tpu.memory_space<vmem>>, %arg7: memref<4x401xf32, #tpu.memory_space<vmem>>) attributes {dimension_semantics = [#tpu.dimension_semantics<parallel>, #tpu.dimension_semantics<parallel>], iteration_bounds = array<i64: 2, 1>, scalar_prefetch = 0 : i64, scratch_operands = 1 : i64, tpu.core_type = #tpu.core_type<tc>, window_params = [{transform_indices = @transform_0, window_bounds = array<i64: 1, 4, 256>}, {pipeline_mode = #tpu.pipeline_mode<synchronous>, transform_indices = @transform_1, window_bounds = array<i64: 2, 256>}, {transform_indices = @transform_2, window_bounds = array<i64: 128, 36>}, {transform_indices = @transform_3, window_bounds = array<i64: 128, 1>}, {transform_indices = @transform_4, window_bounds = array<i64: 1, 128, 256>}]} {
    %cst = arith.constant 0.000000e+00 : f32
    %0 = vector.broadcast %cst : f32 to vector<4x128xf32>
    %c0 = arith.constant 0 : index
    %c0_0 = arith.constant 0 : index
    %1 = vector.load %arg7[%c0, %c0_0] : memref<4x401xf32, #tpu.memory_space<vmem>>, vector<4x128xf32>
    tpu.vector_store %arg7[%c0, %c0_0], %0 {strides = array<i32>} : memref<4x401xf32, #tpu.memory_space<vmem>>, vector<4x128xf32>,
    %cst_1 = arith.constant 0.000000e+00 : f32
    %2 = vector.broadcast %cst_1 : f32 to vector<4x17xf32>
    %c0_2 = arith.constant 0 : index
    %c384 = arith.constant 384 : index
    %3 = vector.load %arg7[%c0_2, %c384] : memref<4x401xf32, #tpu.memory_space<vmem>>, vector<4x17xf32>
    tpu.vector_store %arg7[%c0_2, %c384], %2 {strides = array<i32>} : memref<4x401xf32, #tpu.memory_space<vmem>>, vector<4x17xf32>,
    %c0_3 = arith.constant 0 : index
    %c0_4 = arith.constant 0 : index
    %c0_5 = arith.constant 0 : index
    %4 = vector.load %arg2[%c0_3, %c0_4, %c0_5] : memref<1x4x256xf32, #tpu.memory_space<vmem>>, vector<1x4x256xf32>
    %5 = vector.shape_cast %4 : vector<1x4x256xf32> to vector<4x256xf32>
    %c0_6 = arith.constant 0 : index
    %c128 = arith.constant 128 : index
    %6 = vector.load %arg7[%c0_6, %c128] : memref<4x401xf32, #tpu.memory_space<vmem>>, vector<4x256xf32>
    tpu.vector_store %arg7[%c0_6, %c128], %5 {strides = array<i32>} : memref<4x401xf32, #tpu.memory_space<vmem>>, vector<4x256xf32>,
    %c0_7 = arith.constant 0 : index
    %c0_8 = arith.constant 0 : index
    %7 = vector.load %arg3[%c0_7, %c0_8] : memref<2x256xf32, #tpu.memory_space<vmem>>, vector<1x256xf32>
    %c1 = arith.constant 1 : index
    %c0_9 = arith.constant 0 : index
    %8 = vector.load %arg3[%c1, %c0_9] : memref<2x256xf32, #tpu.memory_space<vmem>>, vector<1x256xf32>
    %c0_10 = arith.constant 0 : index
    %c111 = arith.constant 111 : index
    %9 = vector.load %arg7[%c0_10, %c111] : memref<4x401xf32, #tpu.memory_space<vmem>>, vector<4x256xf32>
    %10 = vector.broadcast %7 : vector<1x256xf32> to vector<4x256xf32>
    %11 = arith.mulf %9, %10 : vector<4x256xf32>
    %c0_11 = arith.constant 0 : index
    %c112 = arith.constant 112 : index
    %12 = vector.load %arg7[%c0_11, %c112] : memref<4x401xf32, #tpu.memory_space<vmem>>, vector<4x256xf32>
    %c0_12 = arith.constant 0 : index
    %c113 = arith.constant 113 : index
    %13 = vector.load %arg7[%c0_12, %c113] : memref<4x401xf32, #tpu.memory_space<vmem>>, vector<4x256xf32>
    %14 = vector.broadcast %8 : vector<1x256xf32> to vector<4x256xf32>
    %15 = arith.mulf %13, %14 : vector<4x256xf32>
    %c0_13 = arith.constant 0 : index
    %c127 = arith.constant 127 : index
    %16 = vector.load %arg7[%c0_13, %c127] : memref<4x401xf32, #tpu.memory_space<vmem>>, vector<4x256xf32>
    %17 = vector.broadcast %7 : vector<1x256xf32> to vector<4x256xf32>
    %18 = arith.mulf %16, %17 : vector<4x256xf32>
    %c0_14 = arith.constant 0 : index
    %c128_15 = arith.constant 128 : index
    %19 = vector.load %arg7[%c0_14, %c128_15] : memref<4x401xf32, #tpu.memory_space<vmem>>, vector<4x256xf32>
    %c0_16 = arith.constant 0 : index
    %c129 = arith.constant 129 : index
    %20 = vector.load %arg7[%c0_16, %c129] : memref<4x401xf32, #tpu.memory_space<vmem>>, vector<4x256xf32>
    %21 = vector.broadcast %8 : vector<1x256xf32> to vector<4x256xf32>
    %22 = arith.mulf %20, %21 : vector<4x256xf32>
    %c0_17 = arith.constant 0 : index
    %c143 = arith.constant 143 : index
    %23 = vector.load %arg7[%c0_17, %c143] : memref<4x401xf32, #tpu.memory_space<vmem>>, vector<4x256xf32>
    %24 = vector.broadcast %7 : vector<1x256xf32> to vector<4x256xf32>
    %25 = arith.mulf %23, %24 : vector<4x256xf32>
    %c0_18 = arith.constant 0 : index
    %c144 = arith.constant 144 : index
    %26 = vector.load %arg7[%c0_18, %c144] : memref<4x401xf32, #tpu.memory_space<vmem>>, vector<4x256xf32>
    %c0_19 = arith.constant 0 : index
    %c145 = arith.constant 145 : index
    %27 = vector.load %arg7[%c0_19, %c145] : memref<4x401xf32, #tpu.memory_space<vmem>>, vector<4x256xf32>
    %28 = vector.broadcast %8 : vector<1x256xf32> to vector<4x256xf32>
    %29 = arith.mulf %27, %28 : vector<4x256xf32>
    %30 = tpu.concatenate %11, %12, %15, %18, %19, %22, %25, %26, %29 in 0 : vector<4x256xf32>, vector<4x256xf32>, vector<4x256xf32>, vector<4x256xf32>, vector<4x256xf32>, vector<4x256xf32>, vector<4x256xf32>, vector<4x256xf32>, vector<4x256xf32> -> vector<36x256xf32>
    %c0_20 = arith.constant 0 : index
    %c0_21 = arith.constant 0 : index
    %31 = vector.load %arg4[%c0_20, %c0_21] : memref<128x36xf32, #tpu.memory_space<vmem>>, vector<128x36xf32>
    %cst_22 = arith.constant dense<0.000000e+00> : vector<128x256xf32>
    %32 = tpu.matmul %31, %30, %cst_22 {dimension_numbers = #tpu.dot_dimension_numbers<[1], [0], [0], [1], [0, 0, 1, 1], [], []>} : vector<128x36xf32>, vector<36x256xf32>, vector<128x256xf32> -> vector<128x256xf32>
    %c0_23 = arith.constant 0 : index
    %c0_24 = arith.constant 0 : index
    %33 = vector.load %arg5[%c0_23, %c0_24] : memref<128x1xf32, #tpu.memory_space<vmem>>, vector<128x1xf32>
    %34 = vector.broadcast %33 : vector<128x1xf32> to vector<128x256xf32>
    %35 = arith.addf %32, %34 : vector<128x256xf32>
    %cst_25 = arith.constant 0.000000e+00 : f32
    %36 = vector.broadcast %cst_25 : f32 to vector<128x256xf32>
    %37 = arith.maximumf %35, %36 : vector<128x256xf32>
    %c0_26 = arith.constant 0 : index
    %c0_27 = arith.constant 0 : index
    %c0_28 = arith.constant 0 : index
    %38 = vector.load %arg6[%c0_26, %c0_27, %c0_28] : memref<1x128x256xf32, #tpu.memory_space<vmem>>, vector<1x128x256xf32>
    %39 = vector.shape_cast %38 : vector<1x128x256xf32> to vector<128x256xf32>
    %40 = vector.shape_cast %37 : vector<128x256xf32> to vector<1x128x256xf32>
    tpu.vector_store %arg6[%c0_26, %c0_27, %c0_28], %40 {strides = array<i32>} : memref<1x128x256xf32, #tpu.memory_space<vmem>>, vector<1x128x256xf32>,
    return
  }
  func.func @transform_0(%arg0: i32, %arg1: i32) -> (i32, i32, i32) {
    %c0_i32 = arith.constant 0 : i32
    %c0_i32_0 = arith.constant 0 : i32
    %c0_i32_1 = arith.constant 0 : i32
    return %arg0, %c0_i32, %c0_i32_0 : i32, i32, i32
  }
  func.func @transform_1(%arg0: i32, %arg1: i32) -> (i32, i32) {
    %c0_i32 = arith.constant 0 : i32
    %c0_i32_0 = arith.constant 0 : i32
    %c0_i32_1 = arith.constant 0 : i32
    return %c0_i32, %c0_i32_0 : i32, i32
  }
  func.func @transform_2(%arg0: i32, %arg1: i32) -> (i32, i32) {
    %c0_i32 = arith.constant 0 : i32
    %c0_i32_0 = arith.constant 0 : i32
    return %arg1, %c0_i32 : i32, i32
  }
  func.func @transform_3(%arg0: i32, %arg1: i32) -> (i32, i32) {
    %c0_i32 = arith.constant 0 : i32
    %c0_i32_0 = arith.constant 0 : i32
    return %arg1, %c0_i32 : i32, i32
  }
  func.func @transform_4(%arg0: i32, %arg1: i32) -> (i32, i32, i32) {
    %c0_i32 = arith.constant 0 : i32
    %c0_i32_0 = arith.constant 0 : i32
    return %arg0, %arg1, %c0_i32 : i32, i32, i32
  }
}

module attributes {stable_mosaic.version = 11 : i64} {
  func.func @_stats_kernel(%arg0: i32, %arg1: i32, %arg2: memref<1x4x256xf32, #tpu.memory_space<vmem>>, %arg3: memref<2x256xf32, #tpu.memory_space<vmem>>, %arg4: memref<128x36xf32, #tpu.memory_space<vmem>>, %arg5: memref<1x128x1xf32, #tpu.memory_space<vmem>>, %arg6: memref<1x128x1xf32, #tpu.memory_space<vmem>>, %arg7: memref<4x401xf32, #tpu.memory_space<vmem>>) attributes {dimension_semantics = [#tpu.dimension_semantics<parallel>, #tpu.dimension_semantics<parallel>], iteration_bounds = array<i64: 2, 1>, scalar_prefetch = 0 : i64, scratch_operands = 1 : i64, tpu.core_type = #tpu.core_type<tc>, window_params = [{transform_indices = @transform_0, window_bounds = array<i64: 1, 4, 256>}, {pipeline_mode = #tpu.pipeline_mode<synchronous>, transform_indices = @transform_1, window_bounds = array<i64: 2, 256>}, {transform_indices = @transform_2, window_bounds = array<i64: 128, 36>}, {transform_indices = @transform_3, window_bounds = array<i64: 1, 128, 1>}, {transform_indices = @transform_4, window_bounds = array<i64: 1, 128, 1>}]} {
    %cst = arith.constant 0.000000e+00 : f32
    %0 = vector.broadcast %cst : f32 to vector<4x128xf32>
    %c0 = arith.constant 0 : index
    %c0_0 = arith.constant 0 : index
    %1 = vector.load %arg7[%c0, %c0_0] : memref<4x401xf32, #tpu.memory_space<vmem>>, vector<4x128xf32>
    tpu.vector_store %arg7[%c0, %c0_0], %0 {strides = array<i32>} : memref<4x401xf32, #tpu.memory_space<vmem>>, vector<4x128xf32>,
    %cst_1 = arith.constant 0.000000e+00 : f32
    %2 = vector.broadcast %cst_1 : f32 to vector<4x17xf32>
    %c0_2 = arith.constant 0 : index
    %c384 = arith.constant 384 : index
    %3 = vector.load %arg7[%c0_2, %c384] : memref<4x401xf32, #tpu.memory_space<vmem>>, vector<4x17xf32>
    tpu.vector_store %arg7[%c0_2, %c384], %2 {strides = array<i32>} : memref<4x401xf32, #tpu.memory_space<vmem>>, vector<4x17xf32>,
    %c0_3 = arith.constant 0 : index
    %c0_4 = arith.constant 0 : index
    %c0_5 = arith.constant 0 : index
    %4 = vector.load %arg2[%c0_3, %c0_4, %c0_5] : memref<1x4x256xf32, #tpu.memory_space<vmem>>, vector<1x4x256xf32>
    %5 = vector.shape_cast %4 : vector<1x4x256xf32> to vector<4x256xf32>
    %c0_6 = arith.constant 0 : index
    %c128 = arith.constant 128 : index
    %6 = vector.load %arg7[%c0_6, %c128] : memref<4x401xf32, #tpu.memory_space<vmem>>, vector<4x256xf32>
    tpu.vector_store %arg7[%c0_6, %c128], %5 {strides = array<i32>} : memref<4x401xf32, #tpu.memory_space<vmem>>, vector<4x256xf32>,
    %c0_7 = arith.constant 0 : index
    %c0_8 = arith.constant 0 : index
    %7 = vector.load %arg3[%c0_7, %c0_8] : memref<2x256xf32, #tpu.memory_space<vmem>>, vector<1x256xf32>
    %c1 = arith.constant 1 : index
    %c0_9 = arith.constant 0 : index
    %8 = vector.load %arg3[%c1, %c0_9] : memref<2x256xf32, #tpu.memory_space<vmem>>, vector<1x256xf32>
    %c0_10 = arith.constant 0 : index
    %c111 = arith.constant 111 : index
    %9 = vector.load %arg7[%c0_10, %c111] : memref<4x401xf32, #tpu.memory_space<vmem>>, vector<4x256xf32>
    %10 = vector.broadcast %7 : vector<1x256xf32> to vector<4x256xf32>
    %11 = arith.mulf %9, %10 : vector<4x256xf32>
    %c0_11 = arith.constant 0 : index
    %c112 = arith.constant 112 : index
    %12 = vector.load %arg7[%c0_11, %c112] : memref<4x401xf32, #tpu.memory_space<vmem>>, vector<4x256xf32>
    %c0_12 = arith.constant 0 : index
    %c113 = arith.constant 113 : index
    %13 = vector.load %arg7[%c0_12, %c113] : memref<4x401xf32, #tpu.memory_space<vmem>>, vector<4x256xf32>
    %14 = vector.broadcast %8 : vector<1x256xf32> to vector<4x256xf32>
    %15 = arith.mulf %13, %14 : vector<4x256xf32>
    %c0_13 = arith.constant 0 : index
    %c127 = arith.constant 127 : index
    %16 = vector.load %arg7[%c0_13, %c127] : memref<4x401xf32, #tpu.memory_space<vmem>>, vector<4x256xf32>
    %17 = vector.broadcast %7 : vector<1x256xf32> to vector<4x256xf32>
    %18 = arith.mulf %16, %17 : vector<4x256xf32>
    %c0_14 = arith.constant 0 : index
    %c128_15 = arith.constant 128 : index
    %19 = vector.load %arg7[%c0_14, %c128_15] : memref<4x401xf32, #tpu.memory_space<vmem>>, vector<4x256xf32>
    %c0_16 = arith.constant 0 : index
    %c129 = arith.constant 129 : index
    %20 = vector.load %arg7[%c0_16, %c129] : memref<4x401xf32, #tpu.memory_space<vmem>>, vector<4x256xf32>
    %21 = vector.broadcast %8 : vector<1x256xf32> to vector<4x256xf32>
    %22 = arith.mulf %20, %21 : vector<4x256xf32>
    %c0_17 = arith.constant 0 : index
    %c143 = arith.constant 143 : index
    %23 = vector.load %arg7[%c0_17, %c143] : memref<4x401xf32, #tpu.memory_space<vmem>>, vector<4x256xf32>
    %24 = vector.broadcast %7 : vector<1x256xf32> to vector<4x256xf32>
    %25 = arith.mulf %23, %24 : vector<4x256xf32>
    %c0_18 = arith.constant 0 : index
    %c144 = arith.constant 144 : index
    %26 = vector.load %arg7[%c0_18, %c144] : memref<4x401xf32, #tpu.memory_space<vmem>>, vector<4x256xf32>
    %c0_19 = arith.constant 0 : index
    %c145 = arith.constant 145 : index
    %27 = vector.load %arg7[%c0_19, %c145] : memref<4x401xf32, #tpu.memory_space<vmem>>, vector<4x256xf32>
    %28 = vector.broadcast %8 : vector<1x256xf32> to vector<4x256xf32>
    %29 = arith.mulf %27, %28 : vector<4x256xf32>
    %30 = tpu.concatenate %11, %12, %15, %18, %19, %22, %25, %26, %29 in 0 : vector<4x256xf32>, vector<4x256xf32>, vector<4x256xf32>, vector<4x256xf32>, vector<4x256xf32>, vector<4x256xf32>, vector<4x256xf32>, vector<4x256xf32>, vector<4x256xf32> -> vector<36x256xf32>
    %c0_20 = arith.constant 0 : index
    %c0_21 = arith.constant 0 : index
    %31 = vector.load %arg4[%c0_20, %c0_21] : memref<128x36xf32, #tpu.memory_space<vmem>>, vector<128x36xf32>
    %cst_22 = arith.constant dense<0.000000e+00> : vector<128x256xf32>
    %32 = tpu.matmul %31, %30, %cst_22 {dimension_numbers = #tpu.dot_dimension_numbers<[1], [0], [0], [1], [0, 0, 1, 1], [], []>} : vector<128x36xf32>, vector<36x256xf32>, vector<128x256xf32> -> vector<128x256xf32>
    %cst_23 = arith.constant dense<0.000000e+00> : vector<128xf32>
    %33 = vector.multi_reduction <add>, %32, %cst_23 [1] : vector<128x256xf32> to vector<128xf32>
    %34 = vector.shape_cast %33 : vector<128xf32> to vector<128x1xf32>
    %c0_24 = arith.constant 0 : index
    %c0_25 = arith.constant 0 : index
    %c0_26 = arith.constant 0 : index
    %35 = vector.load %arg5[%c0_24, %c0_25, %c0_26] : memref<1x128x1xf32, #tpu.memory_space<vmem>>, vector<1x128x1xf32>
    %36 = vector.shape_cast %35 : vector<1x128x1xf32> to vector<128x1xf32>
    %37 = vector.shape_cast %34 : vector<128x1xf32> to vector<1x128x1xf32>
    tpu.vector_store %arg5[%c0_24, %c0_25, %c0_26], %37 {strides = array<i32>} : memref<1x128x1xf32, #tpu.memory_space<vmem>>, vector<1x128x1xf32>,
    %38 = arith.mulf %32, %32 : vector<128x256xf32>
    %cst_27 = arith.constant dense<0.000000e+00> : vector<128xf32>
    %39 = vector.multi_reduction <add>, %38, %cst_27 [1] : vector<128x256xf32> to vector<128xf32>
    %40 = vector.shape_cast %39 : vector<128xf32> to vector<128x1xf32>
    %c0_28 = arith.constant 0 : index
    %c0_29 = arith.constant 0 : index
    %c0_30 = arith.constant 0 : index
    %41 = vector.load %arg6[%c0_28, %c0_29, %c0_30] : memref<1x128x1xf32, #tpu.memory_space<vmem>>, vector<1x128x1xf32>
    %42 = vector.shape_cast %41 : vector<1x128x1xf32> to vector<128x1xf32>
    %43 = vector.shape_cast %40 : vector<128x1xf32> to vector<1x128x1xf32>
    tpu.vector_store %arg6[%c0_28, %c0_29, %c0_30], %43 {strides = array<i32>} : memref<1x128x1xf32, #tpu.memory_space<vmem>>, vector<1x128x1xf32>,
    return
  }
  func.func @transform_0(%arg0: i32, %arg1: i32) -> (i32, i32, i32) {
    %c0_i32 = arith.constant 0 : i32
    %c0_i32_0 = arith.constant 0 : i32
    %c0_i32_1 = arith.constant 0 : i32
    return %arg0, %c0_i32, %c0_i32_0 : i32, i32, i32
  }
  func.func @transform_1(%arg0: i32, %arg1: i32) -> (i32, i32) {
    %c0_i32 = arith.constant 0 : i32
    %c0_i32_0 = arith.constant 0 : i32
    %c0_i32_1 = arith.constant 0 : i32
    return %c0_i32, %c0_i32_0 : i32, i32
  }
  func.func @transform_2(%arg0: i32, %arg1: i32) -> (i32, i32) {
    %c0_i32 = arith.constant 0 : i32
    %c0_i32_0 = arith.constant 0 : i32
    return %arg1, %c0_i32 : i32, i32
  }
  func.func @transform_3(%arg0: i32, %arg1: i32) -> (i32, i32, i32) {
    %c0_i32 = arith.constant 0 : i32
    %c0_i32_0 = arith.constant 0 : i32
    return %arg0, %arg1, %c0_i32 : i32, i32, i32
  }
  func.func @transform_4(%arg0: i32, %arg1: i32) -> (i32, i32, i32) {
    %c0_i32 = arith.constant 0 : i32
    %c0_i32_0 = arith.constant 0 : i32
    return %arg0, %arg1, %c0_i32 : i32, i32, i32
  }
}

</mosaic_0001>

<llo_original>
// kernel: conv_block_forward.3
$region0: #{conv_block_forward.3}
  #allocation0 [shape = 'u32[]', space=smem, size = 0x4, offset = 0x4, fixed_abs, tag = 'smem constant byte address 0x4 - core index']
  #allocation1 [shape = 'u32[144,128]{1,0:T(1,128)}', space=vmem, size = 0x12000, scoped, tag = 'internal scratch']
  #allocation2 [shape = 'f32[4,401]{1,0:T(4,128)}', space=vmem, size = 0x2000, scoped, tag = 'scratch operand']
  %s0 = inlined_call_operand.vmem [shape: f32[2,4,256], index: 0, kind: input, shape index: {}]
  %s1 = inlined_call_operand.vmem [shape: f32[2,256], index: 1, kind: input, shape index: {}]
  %s2 = inlined_call_operand.vmem [shape: f32[128,36], index: 2, kind: input, shape index: {}]
  %s3 = inlined_call_operand.vmem [shape: f32[128,1], index: 3, kind: input, shape index: {}]
  %s4 = inlined_call_operand.vmem [shape: f32[2,128,256], index: 4, kind: output, shape index: {}]
  %s5 = sld [smem:[#allocation0]]
  $region49: #{conv_block_forward.3} parent=0
    _
  %s7 = ssub.s32 1, %s5
  %s8 = scalar_select 0, %s7, %s5
  loop: start=0, step=1, limit=4
  $region2: #{conv_block_forward.3} parent=0 // loop_pre_header
    _
  $region3: #{conv_block_forward.3} parent=0 // loop_header
    %s10 = sphi 0, %s14
    %p11 = scmp.ge.s32.totalorder %s10, 4
    %s17 = sphi 0, %s29
    %s18 = sphi 0, %s25
    %s19 = sphi 0, %s17
    %s20 = sphi 0, %s18
    %s21 = sphi 0, %s19
    %s22 = sphi 0, %s20
    %s32 = sphi 0, %s34
    %s35 = sphi 0, %s32
    %s36 = sphi 0, %s35
    %s52 = sphi 0, %s36
    %s56 = sphi 0, %s56
    %s58 = sphi 0, %s56
    %s59 = sphi 0, %s58
    %s73 = sphi 0, %s59
    %s79 = sphi 0, %s81
    %s82 = sphi 0, %s79
    %s83 = sphi 0, %s82
    %s99 = sphi 0, %s83
    %s105 = sphi 0, %s107
    %s108 = sphi 0, %s105
    %s109 = sphi 0, %s108
    %s125 = sphi 0, %s109
    %s133 = sphi 0, %s135
    %s136 = sphi 0, %s133
    %s137 = sphi 0, %s136
    %s153 = sphi 0, %s137
  $region4: #{conv_block_forward.3} parent=0 // loop_header_branch
    %13 = sbr.rel (%p11) target = $region8
  $region5: #{conv_block_forward.3} parent=0 // loop_body
    %s15 = ssub.s32 %s10, 1
    %s16 = ssub.s32 %s10, 2
    %s23 = sadd.s32 1, %s18
    %p24 = scmp.ge.s32.totalorder %s23, 1
    %s25 = scalar_select %p24, 0, %s23
    %s26 = sadd.s32 1, %s17
    %s27 = scalar_select %p24, %s26, %s17
    %p28 = scmp.ge.s32.totalorder %s27, 2
    %s29 = scalar_select %p28, 0, %s27
    %s30 = ssub.s32 %s17, %s29
    %p31 = scmp.eq.s32.totalorder %s30, 0
    %s33 = sadd.s32 %s32, 1
    %s34 = scalar_select %p31, %s32, %s33
    %p37 = pneg %p31
    %p38 = scmp.eq.s32.totalorder %s10, 1
    %p39 = por %p37, %p38
    %p40 = scmp.ne.s32.totalorder %s32, %s35
    %p41 = scmp.eq.s32.totalorder %s10, 0
    %p42 = por %p40, %p41
    %p43 = scmp.ne.s32.totalorder %s32, %s35
    %p44 = scmp.eq.s32.totalorder %s15, 1
    %p45 = por %p43, %p44
    %p46 = scmp.ne.s32.totalorder %s35, %s36
    %p47 = scmp.eq.s32.totalorder %s15, 0
    %p48 = por %p46, %p47
    %p49 = scmp.ne.s32.totalorder %s35, %s36
    %p50 = scmp.eq.s32.totalorder %s16, 1
    %p51 = por %p49, %p50
    %p53 = scmp.ne.s32.totalorder %s36, %s52
    %p54 = scmp.eq.s32.totalorder %s16, 0
    %p55 = por %p53, %p54
    %s57 = sadd.s32 %s56, 1
    %p60 = scmp.eq.s32.totalorder %s10, 1
    %p61 = scmp.ne.s32.totalorder %s56, %s58
    %p62 = scmp.eq.s32.totalorder %s10, 0
    %p63 = por %p61, %p62
    %p64 = scmp.ne.s32.totalorder %s56, %s58
    %p65 = scmp.eq.s32.totalorder %s15, 1
    %p66 = por %p64, %p65
    %p67 = scmp.ne.s32.totalorder %s58, %s59
    %p68 = scmp.eq.s32.totalorder %s15, 0
    %p69 = por %p67, %p68
    %p70 = scmp.ne.s32.totalorder %s58, %s59
    %p71 = scmp.eq.s32.totalorder %s16, 1
    %p72 = por %p70, %p71
    %p74 = scmp.ne.s32.totalorder %s59, %s73
    %p75 = scmp.eq.s32.totalorder %s16, 0
    %p76 = por %p74, %p75
    %s77 = ssub.s32 %s18, %s25
    %p78 = scmp.eq.s32.totalorder %s77, 0
    %s80 = sadd.s32 %s79, 1
    %s81 = scalar_select %p78, %s79, %s80
    %p84 = pneg %p78
    %p85 = scmp.eq.s32.totalorder %s10, 1
    %p86 = por %p84, %p85
    %p87 = scmp.ne.s32.totalorder %s79, %s82
    %p88 = scmp.eq.s32.totalorder %s10, 0
    %p89 = por %p87, %p88
    %p90 = scmp.ne.s32.totalorder %s79, %s82
    %p91 = scmp.eq.s32.totalorder %s15, 1
    %p92 = por %p90, %p91
    %p93 = scmp.ne.s32.totalorder %s82, %s83
    %p94 = scmp.eq.s32.totalorder %s15, 0
    %p95 = por %p93, %p94
    %p96 = scmp.ne.s32.totalorder %s82, %s83
    %p97 = scmp.eq.s32.totalorder %s16, 1
    %p98 = por %p96, %p97
    %p100 = scmp.ne.s32.totalorder %s83, %s99
    %p101 = scmp.eq.s32.totalorder %s16, 0
    %p102 = por %p100, %p101
    %s103 = ssub.s32 %s18, %s25
    %p104 = scmp.eq.s32.totalorder %s103, 0
    %s106 = sadd.s32 %s105, 1
    %s107 = scalar_select %p104, %s105, %s106
    %p110 = pneg %p104
    %p111 = scmp.eq.s32.totalorder %s10, 1
    %p112 = por %p110, %p111
    %p113 = scmp.ne.s32.totalorder %s105, %s108
    %p114 = scmp.eq.s32.totalorder %s10, 0
    %p115 = por %p113, %p114
    %p116 = scmp.ne.s32.totalorder %s105, %s108
    %p117 = scmp.eq.s32.totalorder %s15, 1
    %p118 = por %p116, %p117
    %p119 = scmp.ne.s32.totalorder %s108, %s109
    %p120 = scmp.eq.s32.totalorder %s15, 0
    %p121 = por %p119, %p120
    %p122 = scmp.ne.s32.totalorder %s108, %s109
    %p123 = scmp.eq.s32.totalorder %s16, 1
    %p124 = por %p122, %p123
    %p126 = scmp.ne.s32.totalorder %s109, %s125
    %p127 = scmp.eq.s32.totalorder %s16, 0
    %p128 = por %p126, %p127
    %s129 = ssub.s32 %s17, %s29
    %s130 = ssub.s32 %s18, %s25
    %s131 = sor.u32 %s129, %s130
    %p132 = scmp.eq.s32.totalorder %s131, 0
    %s134 = sadd.s32 %s133, 1
    %s135 = scalar_select %p132, %s133, %s134
    %p138 = pneg %p132
    %p139 = scmp.eq.s32.totalorder %s10, 1
    %p140 = por %p138, %p139
    %p141 = scmp.ne.s32.totalorder %s133, %s136
    %p142 = scmp.eq.s32.totalorder %s10, 0
    %p143 = por %p141, %p142
    %p144 = scmp.ne.s32.totalorder %s133, %s136
    %p145 = scmp.eq.s32.totalorder %s15, 1
    %p146 = por %p144, %p145
    %p147 = scmp.ne.s32.totalorder %s136, %s137
    %p148 = scmp.eq.s32.totalorder %s15, 0
    %p149 = por %p147, %p148
    %p150 = scmp.ne.s32.totalorder %s136, %s137
    %p151 = scmp.eq.s32.totalorder %s16, 1
    %p152 = por %p150, %p151
    %p154 = scmp.ne.s32.totalorder %s137, %s153
    %p155 = scmp.eq.s32.totalorder %s16, 0
    %p156 = por %p154, %p155
    %p157 = scmp.le.s32.totalorder 1, %s10
    %p158 = scmp.lt.s32.totalorder %s10, 3
    %p159 = pnand %p157, %p158
    %p160 = pneg %p159
    // Predicated region
    $region9: #{conv_block_forward.3} parent=5 // pred_check
      _
    $region10: #{conv_block_forward.3} parent=5 // pred_check_branch
      %162 = sbr.rel (%p159) target = $region12
    $region11: #{conv_block_forward.3} parent=5 // pred_region
      %s163 = ssub.s32 %s10, 1
      // Predicated region
      $region13: #{conv_block_forward.3} parent=11 // pred_check
        %p164 = pneg %p69
      $region14: #{conv_block_forward.3} parent=11 // pred_check_branch
        %166 = sbr.rel (%p164) target = $region16
      $region15: #{conv_block_forward.3} parent=11 // pred_region
        _
      $region16: #{conv_block_forward.3} parent=11 // pred_fallthru
        _
      // Predicated region
      $region17: #{conv_block_forward.3} parent=11 // pred_check
        %p167 = pneg %p95
      $region18: #{conv_block_forward.3} parent=11 // pred_check_branch
        %169 = sbr.rel (%p167) target = $region20
      $region19: #{conv_block_forward.3} parent=11 // pred_region
        %s170 = smul.u32 16, %s20
        %p171 = scmp.lt.s32.totalorder %s170, 15
        %s172 = scalar_select %p171, %s170, 15
        %s173 = smul.addr %s172, 8
        %s174 = scalar_lea.vmem %s2, %s173
        %s175 = smul.u32 16, %s20
      $region20: #{conv_block_forward.3} parent=11 // pred_fallthru
        _
      // Predicated region
      $region21: #{conv_block_forward.3} parent=11 // pred_check
        %p176 = pneg %p121
      $region22: #{conv_block_forward.3} parent=11 // pred_check_branch
        %178 = sbr.rel (%p176) target = $region24
      $region23: #{conv_block_forward.3} parent=11 // pred_region
        %s179 = smul.u32 16, %s20
        %p180 = scmp.lt.s32.totalorder %s179, 15
        %s181 = scalar_select %p180, %s179, 15
        %s182 = smul.addr %s181, 8
        %s183 = scalar_lea.vmem %s3, %s182
        %s184 = smul.u32 16, %s20
      $region24: #{conv_block_forward.3} parent=11 // pred_fallthru
        _
    $region12: #{conv_block_forward.3} parent=5 // pred_fallthru
      _
    %p185 = scmp.lt.s32.totalorder %s10, 2
    // Predicated region
    $region25: #{conv_block_forward.3} parent=5 // pred_check
      %p186 = pneg %p185
    $region26: #{conv_block_forward.3} parent=5 // pred_check_branch
      %188 = sbr.rel (%p186) target = $region28
    $region27: #{conv_block_forward.3} parent=5 // pred_region
      // Predicated region
      $region29: #{conv_block_forward.3} parent=27 // pred_check
        %p189 = pneg %p42
      $region30: #{conv_block_forward.3} parent=27 // pred_check_branch
        %191 = sbr.rel (%p189) target = $region32
      $region31: #{conv_block_forward.3} parent=27 // pred_region
        %p192 = scmp.lt.s32.totalorder %s17, 1
        %s193 = scalar_select %p192, %s17, 1
        %s194 = smul.addr %s193, 2
        %s195 = smul.addr %s194, 4
        %s196 = scalar_lea.vmem %s0, %s195
      $region32: #{conv_block_forward.3} parent=27 // pred_fallthru
        _
    $region28: #{conv_block_forward.3} parent=5 // pred_fallthru
      _
    %p197 = scmp.le.s32.totalorder 1, %s10
    %p198 = scmp.lt.s32.totalorder %s10, 3
    %p199 = pnand %p197, %p198
    %p200 = pneg %p199
    // Predicated region
    $region33: #{conv_block_forward.3} parent=5 // pred_check
      _
    $region34: #{conv_block_forward.3} parent=5 // pred_check_branch
      %202 = sbr.rel (%p199) target = $region36
    $region35: #{conv_block_forward.3} parent=5 // pred_region
      %s203 = ssub.s32 %s10, 1
      %p204 = scmp.lt.s32.totalorder %s19, 1
      %s205 = scalar_select %p204, %s19, 1
      %s206 = smul.addr %s205, 2
      %s207 = smul.addr %s206, 4
      %s208 = scalar_lea.vmem %s0, %s207
      %p209 = pneg %p48
      %p210 = pneg %p45
      %p211 = pneg %p69
      %p212 = pneg %p66
      %s213 = smul.u32 16, %s20
      %p214 = scmp.lt.s32.totalorder %s213, 15
      %s215 = scalar_select %p214, %s213, 15
      %s216 = smul.addr %s215, 8
      %s217 = scalar_lea.vmem %s2, %s216
      %p218 = pneg %p95
      %p219 = pneg %p92
      %s220 = smul.u32 16, %s20
      %p221 = scmp.lt.s32.totalorder %s220, 15
      %s222 = scalar_select %p221, %s220, 15
      %s223 = smul.addr %s222, 8
      %s224 = scalar_lea.vmem %s3, %s223
      %p225 = pneg %p121
      %p226 = pneg %p118
      %p227 = pneg %p149
      %p228 = pneg %p146
      %s229 = smul.u32 16, %s20
      %p230 = scmp.lt.s32.totalorder %s19, 1
      %s231 = scalar_select %p230, %s19, 1
      %p232 = scmp.lt.s32.totalorder %s229, 15
      %s233 = scalar_select %p232, %s229, 15
      %s234 = smul.addr %s233, 2
      %s235 = smul.addr %s231, 32
      %s236 = sadd.s32 %s234, %s235
      %s237 = smul.addr %s236, 8
      %s238 = scalar_lea.vmem %s4, %s237
      %p239 = scmp.lt.s32.totalorder %s19, 1
      %s240 = scalar_select %p239, %s19, 1
      %s241 = smul.addr %s240, 2
      %s242 = smul.addr %s241, 4
      %s243 = scalar_lea.vmem %s0, %s242
      %s244 = smul.u32 16, %s20
      %p245 = scmp.lt.s32.totalorder %s244, 15
      %s246 = scalar_select %p245, %s244, 15
      %s247 = smul.addr %s246, 8
      %s248 = scalar_lea.vmem %s2, %s247
      %s249 = smul.u32 16, %s20
      %s250 = smul.u32 16, %s20
      %p251 = scmp.lt.s32.totalorder %s250, 15
      %s252 = scalar_select %p251, %s250, 15
      %s253 = smul.addr %s252, 8
      %s254 = scalar_lea.vmem %s3, %s253
      %s255 = smul.u32 16, %s20
      %s256 = smul.u32 16, %s20
      %p257 = scmp.lt.s32.totalorder %s19, 1
      %s258 = scalar_select %p257, %s19, 1
      %p259 = scmp.lt.s32.totalorder %s256, 15
      %s260 = scalar_select %p259, %s256, 15
      %s261 = smul.addr %s260, 2
      %s262 = smul.addr %s258, 32
      %s263 = sadd.s32 %s261, %s262
      %s264 = smul.addr %s263, 8
      %s265 = scalar_lea.vmem %s4, %s264
      %s266 = smul.u32 16, %s20
      %267 = vst [vmem:[#allocation2] sm:$0xf] 0.0
      %vm268 = vcmask 134144
      %269 = vst.msk [vmem:[#allocation2 + $0xc] sm:$0xf] %vm268, 0.0
      %v270 = vld [vmem:[%s243] sm:$0xff]
      %271 = vst [vmem:[#allocation2 + $0x4] sm:$0xff] %v270
      %v272 = vld [vmem:[%s1] ss:$2 sm:$0x3]
      %s273 = scalar_lea.vmem %s1, 1
      %v274 = vld [vmem:[%s273] ss:$2 sm:$0x3]
      %v275 = vld [vmem:[#allocation2] sm:$0xff]
      %v276 = vld [vmem:[#allocation2 + $0x8] sm:$0xf]
      %v278 = vlaneseq
      %v279 = vshrl.u32 %v278, 7
      %v280 = vsub.s32 0, %v279
      %v281 = vrot.slane %v272, %v280
      %v282 = vlaneseq
      %v283 = vshrl.u32 %v282, 7
      %v284 = vsub.s32 1, %v283
      %v285 = vrot.slane %v272, %v284
      %v286 = vcombine.low %v281, %v285
      %287 = vrot.lane.b32.xlu0 %v286, 111
      %v288 = vpop.permute.xlu0 %287
      %v289 = vrot.slane %v288, 4
      %vm290 = vcmask 908288
      %v291 = vsel %vm290, %v289, %v288
      %v294 = vmul.f32 %v275, %v291
      %v295 = vmul.f32 %v276, %v289
      %v297 = vlaneseq
      %v298 = vshrl.u32 %v297, 7
      %v299 = vsub.s32 0, %v298
      %v300 = vrot.slane %v274, %v299
      %v301 = vlaneseq
      %v302 = vshrl.u32 %v301, 7
      %v303 = vsub.s32 1, %v302
      %v304 = vrot.slane %v274, %v303
      %v305 = vcombine.low %v300, %v304
      %306 = vrot.lane.b32.xlu0 %v305, 113
      %v307 = vpop.permute.xlu0 %306
      %v308 = vrot.slane %v307, 4
      %vm309 = vcmask 924672
      %v310 = vsel %vm309, %v308, %v307
      %v313 = vmul.f32 %v275, %v310
      %v314 = vmul.f32 %v276, %v308
      %315 = vrot.lane.b32.xlu0 %v286, 127
      %v316 = vpop.permute.xlu0 %315
      %v317 = vrot.slane %v316, 4
      %vm318 = vcmask 1039360
      %v319 = vsel %vm318, %v317, %v316
      %v322 = vmul.f32 %v275, %v319
      %v323 = vmul.f32 %v276, %v317
      %v324 = vld [vmem:[#allocation2 + $0x4] sm:$0xff]
      %v325 = vld [vmem:[#allocation2 + $0xc] sm:$0xf]
      %326 = vrot.lane.b32.xlu0 %v305, 1
      %v327 = vpop.permute.xlu0 %326
      %v328 = vrot.slane %v327, 4
      %vm329 = vcmask 7168
      %v330 = vsel %vm329, %v328, %v327
      %v333 = vmul.f32 %v324, %v330
      %v334 = vmul.f32 %v325, %v328
      %335 = vrot.lane.b32.xlu0 %v286, 15
      %v336 = vpop.permute.xlu0 %335
      %v337 = vrot.slane %v336, 4
      %vm338 = vcmask 121856
      %v339 = vsel %vm338, %v337, %v336
      %v342 = vmul.f32 %v324, %v339
      %v343 = vmul.f32 %v325, %v337
      %344 = vrot.lane.b32.xlu0 %v305, 17
      %v345 = vpop.permute.xlu0 %344
      %v346 = vrot.slane %v345, 4
      %vm347 = vcmask 138240
      %v348 = vsel %vm347, %v346, %v345
      %v351 = vmul.f32 %v324, %v348
      %v352 = vmul.f32 %v325, %v346
      %v354 = vcombine.high %v294, %v294
      %v358 = vcombine.low %v275, %v275
      %v359 = vcombine.low %v276, %v276
      %360 = vrot.lane.b32.xlu0 %v358, 127
      %v361 = vpop.permute.xlu0 %360
      %362 = vrot.lane.b32.xlu0 %v275, 127
      %v363 = vpop.permute.xlu0 %362
      %364 = vrot.lane.b32.xlu0 %v359, 127
      %v365 = vpop.permute.xlu0 %364
      %v366 = vsel %vm318, %v361, %v363
      %v367 = vsel %vm318, %v363, %v365
      %v373 = vcombine.high %v313, %v313
      %374 = vrot.lane.b32.xlu0 %v313, 126
      %v375 = vpop.permute.xlu0 %374
      %376 = vrot.lane.b32.xlu0 %v373, 126
      %v377 = vpop.permute.xlu0 %376
      %378 = vrot.lane.b32.xlu0 %v314, 126
      %v379 = vpop.permute.xlu0 %378
      %vm380 = vcmask 1031168
      %v381 = vsel %vm380, %v375, %v377
      %v382 = vsel %vm380, %v377, %v379
      %v388 = vcombine.low %v322, %v322
      %v389 = vcombine.low %v323, %v323
      %390 = vrot.lane.b32.xlu0 %v388, 112
      %v391 = vpop.permute.xlu0 %390
      %392 = vrot.lane.b32.xlu0 %v322, 112
      %v393 = vpop.permute.xlu0 %392
      %394 = vrot.lane.b32.xlu0 %v389, 112
      %v395 = vpop.permute.xlu0 %394
      %vm396 = vcmask 916480
      %v397 = vsel %vm396, %v391, %v393
      %v398 = vsel %vm396, %v393, %v395
      %v403 = vcombine.high %v324, %v324
      %404 = vrot.lane.b32.xlu0 %v324, 111
      %v405 = vpop.permute.xlu0 %404
      %406 = vrot.lane.b32.xlu0 %v403, 111
      %v407 = vpop.permute.xlu0 %406
      %v408 = vsel %vm290, %v405, %v407
      %v414 = vcombine.low %v333, %v333
      %v415 = vcombine.low %v334, %v334
      %416 = vrot.lane.b32.xlu0 %v414, 110
      %v417 = vpop.permute.xlu0 %416
      %418 = vrot.lane.b32.xlu0 %v333, 110
      %v419 = vpop.permute.xlu0 %418
      %420 = vrot.lane.b32.xlu0 %v415, 110
      %v421 = vpop.permute.xlu0 %420
      %vm422 = vcmask 900096
      %v423 = vsel %vm422, %v417, %v419
      %v424 = vsel %vm422, %v419, %v421
      %v430 = vcombine.high %v342, %v342
      %431 = vrot.lane.b32.xlu0 %v342, 96
      %v432 = vpop.permute.xlu0 %431
      %433 = vrot.lane.b32.xlu0 %v430, 96
      %v434 = vpop.permute.xlu0 %433
      %435 = vrot.lane.b32.xlu0 %v343, 96
      %v436 = vpop.permute.xlu0 %435
      %vm437 = vcmask 785408
      %v438 = vsel %vm437, %v432, %v434
      %v439 = vsel %vm437, %v434, %v436
      %v444 = vcombine.low %v324, %v324
      %v445 = vcombine.low %v325, %v325
      %446 = vrot.lane.b32.xlu0 %v444, 95
      %v447 = vpop.permute.xlu0 %446
      %448 = vrot.lane.b32.xlu0 %v324, 95
      %v449 = vpop.permute.xlu0 %448
      %450 = vrot.lane.b32.xlu0 %v445, 95
      %v451 = vpop.permute.xlu0 %450
      %vm452 = vcmask 777216
      %v453 = vsel %vm452, %v447, %v449
      %v454 = vsel %vm452, %v449, %v451
      %v460 = vcombine.high %v351, %v351
      %461 = vrot.lane.b32.xlu0 %v351, 94
      %v462 = vpop.permute.xlu0 %461
      %463 = vrot.lane.b32.xlu0 %v460, 94
      %v464 = vpop.permute.xlu0 %463
      %465 = vrot.lane.b32.xlu0 %v352, 94
      %v466 = vpop.permute.xlu0 %465
      %vm467 = vcmask 769024
      %v468 = vsel %vm467, %v462, %v464
      %v469 = vsel %vm467, %v464, %v466
      %vm470 = vcmask 1043456
      %v471 = vsel %vm470, %v294, %v366
      %v472 = vsel %vm470, %v354, %v367
      %v473 = vsel %vm470, %v295, %v365
      %v474 = vsel %vm470, %v381, %v397
      %v475 = vsel %vm470, %v382, %v398
      %v476 = vsel %vm470, %v379, %v395
      %v477 = vsel %vm470, %v405, %v417
      %v478 = vsel %vm470, %v408, %v423
      %v479 = vsel %vm470, %v407, %v424
      %v480 = vsel %vm470, %v432, %v447
      %v481 = vsel %vm470, %v438, %v453
      %v482 = vsel %vm470, %v439, %v454
      %v483 = vld [vmem:[%s248] sm:$0xff]
      %v484 = vld [vmem:[%s248 + $0x8] sm:$0xff]
      %v485 = vld [vmem:[%s248 + $0x10] sm:$0xff]
      %v486 = vld [vmem:[%s248 + $0x18] sm:$0xff]
      %v487 = vld [vmem:[%s248 + $0x20] sm:$0xff]
      %v488 = vld [vmem:[%s248 + $0x28] sm:$0xff]
      %v489 = vld [vmem:[%s248 + $0x30] sm:$0xff]
      %v490 = vld [vmem:[%s248 + $0x38] sm:$0xff]
      %v491 = vld [vmem:[%s248 + $0x40] sm:$0xff]
      %v492 = vld [vmem:[%s248 + $0x48] sm:$0xff]
      %v493 = vld [vmem:[%s248 + $0x50] sm:$0xff]
      %v494 = vld [vmem:[%s248 + $0x58] sm:$0xff]
      %v495 = vld [vmem:[%s248 + $0x60] sm:$0xff]
      %v496 = vld [vmem:[%s248 + $0x68] sm:$0xff]
      %v497 = vld [vmem:[%s248 + $0x70] sm:$0xff]
      %v498 = vld [vmem:[%s248 + $0x78] sm:$0xff]
      %v499 = vld [vmem:[%s254] sm:$0xff]
      %v500 = vld [vmem:[%s254 + $0x8] sm:$0xff]
      %v501 = vld [vmem:[%s254 + $0x10] sm:$0xff]
      %v502 = vld [vmem:[%s254 + $0x18] sm:$0xff]
      %v503 = vld [vmem:[%s254 + $0x20] sm:$0xff]
      %v504 = vld [vmem:[%s254 + $0x28] sm:$0xff]
      %v505 = vld [vmem:[%s254 + $0x30] sm:$0xff]
      %v506 = vld [vmem:[%s254 + $0x38] sm:$0xff]
      %v507 = vld [vmem:[%s254 + $0x40] sm:$0xff]
      %v508 = vld [vmem:[%s254 + $0x48] sm:$0xff]
      %v509 = vld [vmem:[%s254 + $0x50] sm:$0xff]
      %v510 = vld [vmem:[%s254 + $0x58] sm:$0xff]
      %v511 = vld [vmem:[%s254 + $0x60] sm:$0xff]
      %v512 = vld [vmem:[%s254 + $0x68] sm:$0xff]
      %v513 = vld [vmem:[%s254 + $0x70] sm:$0xff]
      %v514 = vld [vmem:[%s254 + $0x78] sm:$0xff]
      %516 = vset.pattern.permute.xlu0 0
      %517 = vperm.xlu0 %516, %v499
      %v518 = vpop.permute.xlu0 %517
      %521 = vset.pattern.permute.xlu0 0
      %522 = vperm.xlu0 %521, %v500
      %v523 = vpop.permute.xlu0 %522
      %526 = vset.pattern.permute.xlu0 0
      %527 = vperm.xlu0 %526, %v501
      %v528 = vpop.permute.xlu0 %527
      %531 = vset.pattern.permute.xlu0 0
      %532 = vperm.xlu0 %531, %v502
      %v533 = vpop.permute.xlu0 %532
      %536 = vset.pattern.permute.xlu0 0
      %537 = vperm.xlu0 %536, %v503
      %v538 = vpop.permute.xlu0 %537
      %541 = vset.pattern.permute.xlu0 0
      %542 = vperm.xlu0 %541, %v504
      %v543 = vpop.permute.xlu0 %542
      %546 = vset.pattern.permute.xlu0 0
      %547 = vperm.xlu0 %546, %v505
      %v548 = vpop.permute.xlu0 %547
      %551 = vset.pattern.permute.xlu0 0
      %552 = vperm.xlu0 %551, %v506
      %v553 = vpop.permute.xlu0 %552
      %556 = vset.pattern.permute.xlu0 0
      %557 = vperm.xlu0 %556, %v507
      %v558 = vpop.permute.xlu0 %557
      %561 = vset.pattern.permute.xlu0 0
      %562 = vperm.xlu0 %561, %v508
      %v563 = vpop.permute.xlu0 %562
      %566 = vset.pattern.permute.xlu0 0
      %567 = vperm.xlu0 %566, %v509
      %v568 = vpop.permute.xlu0 %567
      %571 = vset.pattern.permute.xlu0 0
      %572 = vperm.xlu0 %571, %v510
      %v573 = vpop.permute.xlu0 %572
      %576 = vset.pattern.permute.xlu0 0
      %577 = vperm.xlu0 %576, %v511
      %v578 = vpop.permute.xlu0 %577
      %581 = vset.pattern.permute.xlu0 0
      %582 = vperm.xlu0 %581, %v512
      %v583 = vpop.permute.xlu0 %582
      %586 = vset.pattern.permute.xlu0 0
      %587 = vperm.xlu0 %586, %v513
      %v588 = vpop.permute.xlu0 %587
      %591 = vset.pattern.permute.xlu0 0
      %592 = vperm.xlu0 %591, %v514
      %v593 = vpop.permute.xlu0 %592
      %607 = vrot.lane.b32.xlu0 %v471, 17
      %v608 = vpop.permute.xlu0 %607
      %609 = vrot.lane.b32.xlu0 %v472, 17
      %v610 = vpop.permute.xlu0 %609
      %611 = vrot.lane.b32.xlu0 %v473, 17
      %v612 = vpop.permute.xlu0 %611
      %613 = vrot.lane.b32.xlu0 %v474, 17
      %v614 = vpop.permute.xlu0 %613
      %615 = vrot.lane.b32.xlu0 %v475, 17
      %v616 = vpop.permute.xlu0 %615
      %617 = vrot.lane.b32.xlu0 %v476, 17
      %v618 = vpop.permute.xlu0 %617
      %619 = vrot.lane.b32.xlu0 %v477, 17
      %v620 = vpop.permute.xlu0 %619
      %621 = vrot.lane.b32.xlu0 %v478, 17
      %v622 = vpop.permute.xlu0 %621
      %623 = vrot.lane.b32.xlu0 %v479, 17
      %v624 = vpop.permute.xlu0 %623
      %625 = vrot.lane.b32.xlu0 %v480, 17
      %v626 = vpop.permute.xlu0 %625
      %627 = vrot.lane.b32.xlu0 %v481, 17
      %v628 = vpop.permute.xlu0 %627
      %629 = vrot.lane.b32.xlu0 %v482, 17
      %v630 = vpop.permute.xlu0 %629
      %631 = vrot.lane.b32.xlu0 %v462, 17
      %v632 = vpop.permute.xlu0 %631
      %633 = vrot.lane.b32.xlu0 %v468, 17
      %v634 = vpop.permute.xlu0 %633
      %635 = vrot.lane.b32.xlu0 %v469, 17
      %v636 = vpop.permute.xlu0 %635
      %v637 = vsel %vm347, %v608, %v610
      %v638 = vsel %vm347, %v610, %v612
      %v639 = vsel %vm347, %v614, %v616
      %v640 = vsel %vm347, %v616, %v618
      %v641 = vsel %vm347, %v620, %v622
      %v642 = vsel %vm347, %v622, %v624
      %v643 = vsel %vm347, %v626, %v628
      %v644 = vsel %vm347, %v628, %v630
      %v645 = vsel %vm347, %v632, %v634
      %v646 = vsel %vm347, %v634, %v636
      %vm655 = vcmask 293888
      %v657 = vsel %vm655, %v483, 0
      %v660 = vsel %vm655, %v484, 0
      %v663 = vsel %vm655, %v485, 0
      %v666 = vsel %vm655, %v486, 0
      %v669 = vsel %vm655, %v487, 0
      %v672 = vsel %vm655, %v488, 0
      %v675 = vsel %vm655, %v489, 0
      %v678 = vsel %vm655, %v490, 0
      %v681 = vsel %vm655, %v491, 0
      %v684 = vsel %vm655, %v492, 0
      %v687 = vsel %vm655, %v493, 0
      %v690 = vsel %vm655, %v494, 0
      %v693 = vsel %vm655, %v495, 0
      %v696 = vsel %vm655, %v496, 0
      %v699 = vsel %vm655, %v497, 0
      %v702 = vsel %vm655, %v498, 0
      %v704 = vsel %vm470, %v645, 0
      %v706 = vsel %vm470, %v646, 0
      %708 = vmatprep.subr.mxu0 %v638
      %709 = vmatpush1.msra.mxu0 %v637
      %710 = vmatprep.subr.mxu0 %v640
      %711 = vmatpush1.msra.mxu0 %v639
      %712 = vmatprep.subr.mxu0 %v642
      %713 = vmatpush1.msra.mxu0 %v641
      %714 = vmatprep.subr.mxu0 %v644
      %715 = vmatpush1.msra.mxu0 %v643
      %716 = vmatprep.subr.mxu0 %v706
      %717 = vmatpush1.msra.mxu0 %v704
      %718 = vmatprep.subr.mxu0 0.0
      %719 = vmatpush1.msra.mxu0 0.0
      %720 = vmatprep.subr.mxu0 0.0
      %721 = vmatpush1.msra.mxu0 0.0
      %722 = vmatprep.subr.mxu0 0.0
      %723 = vmatpush1.msra.mxu0 0.0
      %724 = vmatprep.subr.mxu0 0.0
      %725 = vmatpush1.msra.mxu0 0.0
      %726 = vmatprep.subr.mxu0 0.0
      %727 = vmatpush1.msra.mxu0 0.0
      %728 = vmatprep.subr.mxu0 0.0
      %729 = vmatpush1.msra.mxu0 0.0
      %730 = vmatprep.subr.mxu0 0.0
      %731 = vmatpush1.msra.mxu0 0.0
      %732 = vmatprep.subr.mxu0 0.0
      %733 = vmatpush1.msra.mxu0 0.0
      %734 = vmatprep.subr.mxu0 0.0
      %735 = vmatpush1.msra.mxu0 0.0
      %736 = vmatprep.subr.mxu0 0.0
      %737 = vmatpush1.msra.mxu0 0.0
      %738 = vmatprep.subr.mxu0 0.0
      %739 = vmatpush1.msra.mxu0 0.0
      %740 = vmatprep.subr.mxu0 0.0
      %741 = vmatpush1.msra.mxu0 0.0
      %742 = vmatprep.subr.mxu0 0.0
      %743 = vmatpush1.msra.mxu0 0.0
      %744 = vmatprep.subr.mxu0 0.0
      %745 = vmatpush1.msra.mxu0 0.0
      %746 = vmatprep.subr.mxu0 0.0
      %747 = vmatpush1.msra.mxu0 0.0
      %748 = vmatprep.subr.mxu0 0.0
      %749 = vmatpush1.msra.mxu0 0.0
      %750 = vmatprep.subr.mxu0 0.0
      %751 = vmatpush1.msra.mxu0 0.0
      %752 = vmatprep.subr.mxu0 0.0
      %753 = vmatpush1.msra.mxu0 0.0
      %754 = vmatprep.subr.mxu0 0.0
      %755 = vmatpush1.msra.mxu0 0.0
      %756 = vmatprep.subr.mxu0 0.0
      %757 = vmatpush1.msra.mxu0 0.0
      %758 = vmatprep.subr.mxu0 0.0
      %759 = vmatpush1.msra.mxu0 0.0
      %760 = vmatprep.subr.mxu0 0.0
      %761 = vmatpush1.msra.mxu0 0.0
      %762 = vmatprep.subr.mxu0 0.0
      %763 = vmatpush1.msra.mxu0 0.0
      %764 = vmatprep.subr.mxu0 0.0
      %765 = vmatpush1.msra.mxu0 0.0
      %766 = vmatprep.subr.mxu0 0.0
      %767 = vmatpush1.msra.mxu0 0.0
      %768 = vmatprep.subr.mxu0 0.0
      %769 = vmatpush1.msra.mxu0 0.0
      %770 = vmatprep.subr.mxu0 0.0
      %771 = vmatpush1.msra.mxu0 0.0
      %772 = vmatprep.mubr.f32.mxu0 0.0
      %773 = vmatmul.mubr.f32.gmra.mrb[0].mxu0 %v657
      %v774 = vpop.f32.mrb[0].mxu0
      %v775 = vadd.f32 %v518, %v774
      %v776 = vpop.f32.mrb[0].mxu0
      %v777 = vadd.f32 %v518, %v776
      %778 = vmatprep.mubr.f32.mxu0 0.0
      %779 = vmatmul.mubr.f32.gmra.mrb[0].mxu0 %v660
      %v780 = vpop.f32.mrb[0].mxu0
      %v781 = vadd.f32 %v523, %v780
      %v782 = vpop.f32.mrb[0].mxu0
      %v783 = vadd.f32 %v523, %v782
      %784 = vmatprep.mubr.f32.mxu0 0.0
      %785 = vmatmul.mubr.f32.gmra.mrb[0].mxu0 %v663
      %v786 = vpop.f32.mrb[0].mxu0
      %v787 = vadd.f32 %v528, %v786
      %v788 = vpop.f32.mrb[0].mxu0
      %v789 = vadd.f32 %v528, %v788
      %790 = vmatprep.mubr.f32.mxu0 0.0
      %791 = vmatmul.mubr.f32.gmra.mrb[0].mxu0 %v666
      %v792 = vpop.f32.mrb[0].mxu0
      %v793 = vadd.f32 %v533, %v792
      %v794 = vpop.f32.mrb[0].mxu0
      %v795 = vadd.f32 %v533, %v794
      %796 = vmatprep.mubr.f32.mxu0 0.0
      %797 = vmatmul.mubr.f32.gmra.mrb[0].mxu0 %v669
      %v798 = vpop.f32.mrb[0].mxu0
      %v799 = vadd.f32 %v538, %v798
      %v800 = vpop.f32.mrb[0].mxu0
      %v801 = vadd.f32 %v538, %v800
      %802 = vmatprep.mubr.f32.mxu0 0.0
      %803 = vmatmul.mubr.f32.gmra.mrb[0].mxu0 %v672
      %v804 = vpop.f32.mrb[0].mxu0
      %v805 = vadd.f32 %v543, %v804
      %v806 = vpop.f32.mrb[0].mxu0
      %v807 = vadd.f32 %v543, %v806
      %808 = vmatprep.mubr.f32.mxu0 0.0
      %809 = vmatmul.mubr.f32.gmra.mrb[0].mxu0 %v675
      %v810 = vpop.f32.mrb[0].mxu0
      %v811 = vadd.f32 %v548, %v810
      %v812 = vpop.f32.mrb[0].mxu0
      %v813 = vadd.f32 %v548, %v812
      %814 = vmatprep.mubr.f32.mxu0 0.0
      %815 = vmatmul.mubr.f32.gmra.mrb[0].mxu0 %v678
      %v816 = vpop.f32.mrb[0].mxu0
      %v817 = vadd.f32 %v553, %v816
      %v818 = vpop.f32.mrb[0].mxu0
      %v819 = vadd.f32 %v553, %v818
      %820 = vmatprep.mubr.f32.mxu0 0.0
      %821 = vmatmul.mubr.f32.gmra.mrb[0].mxu0 %v681
      %v822 = vpop.f32.mrb[0].mxu0
      %v823 = vadd.f32 %v558, %v822
      %v824 = vpop.f32.mrb[0].mxu0
      %v825 = vadd.f32 %v558, %v824
      %826 = vmatprep.mubr.f32.mxu0 0.0
      %827 = vmatmul.mubr.f32.gmra.mrb[0].mxu0 %v684
      %v828 = vpop.f32.mrb[0].mxu0
      %v829 = vadd.f32 %v563, %v828
      %v830 = vpop.f32.mrb[0].mxu0
      %v831 = vadd.f32 %v563, %v830
      %832 = vmatprep.mubr.f32.mxu0 0.0
      %833 = vmatmul.mubr.f32.gmra.mrb[0].mxu0 %v687
      %v834 = vpop.f32.mrb[0].mxu0
      %v835 = vadd.f32 %v568, %v834
      %v836 = vpop.f32.mrb[0].mxu0
      %v837 = vadd.f32 %v568, %v836
      %838 = vmatprep.mubr.f32.mxu0 0.0
      %839 = vmatmul.mubr.f32.gmra.mrb[0].mxu0 %v690
      %v840 = vpop.f32.mrb[0].mxu0
      %v841 = vadd.f32 %v573, %v840
      %v842 = vpop.f32.mrb[0].mxu0
      %v843 = vadd.f32 %v573, %v842
      %844 = vmatprep.mubr.f32.mxu0 0.0
      %845 = vmatmul.mubr.f32.gmra.mrb[0].mxu0 %v693
      %v846 = vpop.f32.mrb[0].mxu0
      %v847 = vadd.f32 %v578, %v846
      %v848 = vpop.f32.mrb[0].mxu0
      %v849 = vadd.f32 %v578, %v848
      %850 = vmatprep.mubr.f32.mxu0 0.0
      %851 = vmatmul.mubr.f32.gmra.mrb[0].mxu0 %v696
      %v852 = vpop.f32.mrb[0].mxu0
      %v853 = vadd.f32 %v583, %v852
      %v854 = vpop.f32.mrb[0].mxu0
      %v855 = vadd.f32 %v583, %v854
      %856 = vmatprep.mubr.f32.mxu0 0.0
      %857 = vmatmul.mubr.f32.gmra.mrb[0].mxu0 %v699
      %v858 = vpop.f32.mrb[0].mxu0
      %v859 = vadd.f32 %v588, %v858
      %v860 = vpop.f32.mrb[0].mxu0
      %v861 = vadd.f32 %v588, %v860
      %862 = vmatprep.mubr.f32.mxu0 0.0
      %863 = vmatmul.mubr.f32.gmra.mrb[0].mxu0 %v702
      %v864 = vpop.f32.mrb[0].mxu0
      %v865 = vadd.f32 %v593, %v864
      %v866 = vpop.f32.mrb[0].mxu0
      %v867 = vadd.f32 %v593, %v866
      %868 = vdwg.mxu0
      %v869 = vmax.f32 %v775, 0.0
      %v870 = vmax.f32 %v777, 0.0
      %v871 = vmax.f32 %v781, 0.0
      %v872 = vmax.f32 %v783, 0.0
      %v873 = vmax.f32 %v787, 0.0
      %v874 = vmax.f32 %v789, 0.0
      %v875 = vmax.f32 %v793, 0.0
      %v876 = vmax.f32 %v795, 0.0
      %v877 = vmax.f32 %v799, 0.0
      %v878 = vmax.f32 %v801, 0.0
      %v879 = vmax.f32 %v805, 0.0
      %v880 = vmax.f32 %v807, 0.0
      %v881 = vmax.f32 %v811, 0.0
      %v882 = vmax.f32 %v813, 0.0
      %v883 = vmax.f32 %v817, 0.0
      %v884 = vmax.f32 %v819, 0.0
      %v885 = vmax.f32 %v823, 0.0
      %v886 = vmax.f32 %v825, 0.0
      %v887 = vmax.f32 %v829, 0.0
      %v888 = vmax.f32 %v831, 0.0
      %v889 = vmax.f32 %v835, 0.0
      %v890 = vmax.f32 %v837, 0.0
      %v891 = vmax.f32 %v841, 0.0
      %v892 = vmax.f32 %v843, 0.0
      %v893 = vmax.f32 %v847, 0.0
      %v894 = vmax.f32 %v849, 0.0
      %v895 = vmax.f32 %v853, 0.0
      %v896 = vmax.f32 %v855, 0.0
      %v897 = vmax.f32 %v859, 0.0
      %v898 = vmax.f32 %v861, 0.0
      %v899 = vmax.f32 %v865, 0.0
      %v900 = vmax.f32 %v867, 0.0
      %901 = vst [vmem:[%s265] sm:$0xff] %v869
      %902 = vst [vmem:[%s265 + $0x8] sm:$0xff] %v870
      %903 = vst [vmem:[%s265 + $0x10] sm:$0xff] %v871
      %904 = vst [vmem:[%s265 + $0x18] sm:$0xff] %v872
      %905 = vst [vmem:[%s265 + $0x20] sm:$0xff] %v873
      %906 = vst [vmem:[%s265 + $0x28] sm:$0xff] %v874
      %907 = vst [vmem:[%s265 + $0x30] sm:$0xff] %v875
      %908 = vst [vmem:[%s265 + $0x38] sm:$0xff] %v876
      %909 = vst [vmem:[%s265 + $0x40] sm:$0xff] %v877
      %910 = vst [vmem:[%s265 + $0x48] sm:$0xff] %v878
      %911 = vst [vmem:[%s265 + $0x50] sm:$0xff] %v879
      %912 = vst [vmem:[%s265 + $0x58] sm:$0xff] %v880
      %913 = vst [vmem:[%s265 + $0x60] sm:$0xff] %v881
      %914 = vst [vmem:[%s265 + $0x68] sm:$0xff] %v882
      %915 = vst [vmem:[%s265 + $0x70] sm:$0xff] %v883
      %916 = vst [vmem:[%s265 + $0x78] sm:$0xff] %v884
      %917 = vst [vmem:[%s265 + $0x80] sm:$0xff] %v885
      %918 = vst [vmem:[%s265 + $0x88] sm:$0xff] %v886
      %919 = vst [vmem:[%s265 + $0x90] sm:$0xff] %v887
      %920 = vst [vmem:[%s265 + $0x98] sm:$0xff] %v888
      %921 = vst [vmem:[%s265 + $0xa0] sm:$0xff] %v889
      %922 = vst [vmem:[%s265 + $0xa8] sm:$0xff] %v890
      %923 = vst [vmem:[%s265 + $0xb0] sm:$0xff] %v891
      %924 = vst [vmem:[%s265 + $0xb8] sm:$0xff] %v892
      %925 = vst [vmem:[%s265 + $0xc0] sm:$0xff] %v893
      %926 = vst [vmem:[%s265 + $0xc8] sm:$0xff] %v894
      %927 = vst [vmem:[%s265 + $0xd0] sm:$0xff] %v895
      %928 = vst [vmem:[%s265 + $0xd8] sm:$0xff] %v896
      %929 = vst [vmem:[%s265 + $0xe0] sm:$0xff] %v897
      %930 = vst [vmem:[%s265 + $0xe8] sm:$0xff] %v898
      %931 = vst [vmem:[%s265 + $0xf0] sm:$0xff] %v899
      %932 = vst [vmem:[%s265 + $0xf8] sm:$0xff] %v900
      %s933 = smul.u32 16, %s20
      %p934 = scmp.lt.s32.totalorder %s19, 1
      %s935 = scalar_select %p934, %s19, 1
      %p936 = scmp.lt.s32.totalorder %s933, 15
      %s937 = scalar_select %p936, %s933, 15
      %s938 = smul.addr %s937, 2
      %s939 = smul.addr %s935, 32
      %s940 = sadd.s32 %s938, %s939
      %s941 = smul.addr %s940, 8
      %s942 = scalar_lea.vmem %s4, %s941
      // Predicated region
      $region37: #{conv_block_forward.3} parent=35 // pred_check
        %p943 = pneg %p146
      $region38: #{conv_block_forward.3} parent=35 // pred_check_branch
        %945 = sbr.rel (%p943) target = $region40
      $region39: #{conv_block_forward.3} parent=35 // pred_region
        %s946 = smul.u32 16, %s20
      $region40: #{conv_block_forward.3} parent=35 // pred_fallthru
        _
    $region36: #{conv_block_forward.3} parent=5 // pred_fallthru
      _
    %p947 = scmp.le.s32.totalorder 2, %s10
    // Predicated region
    $region41: #{conv_block_forward.3} parent=5 // pred_check
      %p948 = pneg %p947
    $region42: #{conv_block_forward.3} parent=5 // pred_check_branch
      %950 = sbr.rel (%p948) target = $region44
    $region43: #{conv_block_forward.3} parent=5 // pred_region
      %s951 = ssub.s32 %s10, 2
      // Predicated region
      $region45: #{conv_block_forward.3} parent=43 // pred_check
        %p952 = pneg %p152
      $region46: #{conv_block_forward.3} parent=43 // pred_check_branch
        %954 = sbr.rel (%p952) target = $region48
      $region47: #{conv_block_forward.3} parent=43 // pred_region
        %s955 = smul.u32 16, %s22
        %p956 = scmp.lt.s32.totalorder %s21, 1
        %s957 = scalar_select %p956, %s21, 1
        %p958 = scmp.lt.s32.totalorder %s955, 15
        %s959 = scalar_select %p958, %s955, 15
        %s960 = smul.addr %s959, 2
        %s961 = smul.addr %s957, 32
        %s962 = sadd.s32 %s960, %s961
        %s963 = smul.addr %s962, 8
        %s964 = scalar_lea.vmem %s4, %s963
      $region48: #{conv_block_forward.3} parent=43 // pred_fallthru
        _
    $region44: #{conv_block_forward.3} parent=5 // pred_fallthru
      _
  $region6: #{conv_block_forward.3} parent=0 // loop_footer
    %s14 = sadd.s32 1, %s10
  $region7: #{conv_block_forward.3} parent=0 // loop_footer_branch
    %9 = sbr.rel target = $region3
  $region8: #{conv_block_forward.3} parent=0 // loop_exit
    _

// kernel: conv_block_forward.2
$region0: #{conv_block_forward.2}
  #allocation0 [shape = 'u32[]', space=smem, size = 0x4, offset = 0x4, fixed_abs, tag = 'smem constant byte address 0x4 - core index']
  #allocation1 [shape = 'u32[144,128]{1,0:T(1,128)}', space=vmem, size = 0x12000, scoped, tag = 'internal scratch']
  #allocation2 [shape = 'f32[4,401]{1,0:T(4,128)}', space=vmem, size = 0x2000, scoped, tag = 'scratch operand']
  %s0 = inlined_call_operand.vmem [shape: f32[2,4,256], index: 0, kind: input, shape index: {}]
  %s1 = inlined_call_operand.vmem [shape: f32[2,256], index: 1, kind: input, shape index: {}]
  %s2 = inlined_call_operand.vmem [shape: f32[128,36], index: 2, kind: input, shape index: {}]
  %s3 = inlined_call_operand.vmem [shape: f32[2,128,1], index: 3, kind: output, shape index: {0}]
  %s4 = inlined_call_operand.vmem [shape: f32[2,128,1], index: 4, kind: output, shape index: {1}]
  %5 = xla_tuple %s3, %s4
  %s6 = sld [smem:[#allocation0]]
  $region53: #{conv_block_forward.2} parent=0
    _
  %s8 = ssub.s32 1, %s6
  %s9 = scalar_select 0, %s8, %s6
  loop: start=0, step=1, limit=4
  $region2: #{conv_block_forward.2} parent=0 // loop_pre_header
    _
  $region3: #{conv_block_forward.2} parent=0 // loop_header
    %s11 = sphi 0, %s15
    %p12 = scmp.ge.s32.totalorder %s11, 4
    %s18 = sphi 0, %s30
    %s19 = sphi 0, %s26
    %s20 = sphi 0, %s18
    %s21 = sphi 0, %s19
    %s22 = sphi 0, %s20
    %s23 = sphi 0, %s21
    %s33 = sphi 0, %s35
    %s36 = sphi 0, %s33
    %s37 = sphi 0, %s36
    %s53 = sphi 0, %s37
    %s57 = sphi 0, %s57
    %s59 = sphi 0, %s57
    %s60 = sphi 0, %s59
    %s74 = sphi 0, %s60
    %s80 = sphi 0, %s82
    %s83 = sphi 0, %s80
    %s84 = sphi 0, %s83
    %s100 = sphi 0, %s84
    %s108 = sphi 0, %s110
    %s111 = sphi 0, %s108
    %s112 = sphi 0, %s111
    %s128 = sphi 0, %s112
    %s136 = sphi 0, %s138
    %s139 = sphi 0, %s136
    %s140 = sphi 0, %s139
    %s156 = sphi 0, %s140
  $region4: #{conv_block_forward.2} parent=0 // loop_header_branch
    %14 = sbr.rel (%p12) target = $region8
  $region5: #{conv_block_forward.2} parent=0 // loop_body
    %s16 = ssub.s32 %s11, 1
    %s17 = ssub.s32 %s11, 2
    %s24 = sadd.s32 1, %s19
    %p25 = scmp.ge.s32.totalorder %s24, 1
    %s26 = scalar_select %p25, 0, %s24
    %s27 = sadd.s32 1, %s18
    %s28 = scalar_select %p25, %s27, %s18
    %p29 = scmp.ge.s32.totalorder %s28, 2
    %s30 = scalar_select %p29, 0, %s28
    %s31 = ssub.s32 %s18, %s30
    %p32 = scmp.eq.s32.totalorder %s31, 0
    %s34 = sadd.s32 %s33, 1
    %s35 = scalar_select %p32, %s33, %s34
    %p38 = pneg %p32
    %p39 = scmp.eq.s32.totalorder %s11, 1
    %p40 = por %p38, %p39
    %p41 = scmp.ne.s32.totalorder %s33, %s36
    %p42 = scmp.eq.s32.totalorder %s11, 0
    %p43 = por %p41, %p42
    %p44 = scmp.ne.s32.totalorder %s33, %s36
    %p45 = scmp.eq.s32.totalorder %s16, 1
    %p46 = por %p44, %p45
    %p47 = scmp.ne.s32.totalorder %s36, %s37
    %p48 = scmp.eq.s32.totalorder %s16, 0
    %p49 = por %p47, %p48
    %p50 = scmp.ne.s32.totalorder %s36, %s37
    %p51 = scmp.eq.s32.totalorder %s17, 1
    %p52 = por %p50, %p51
    %p54 = scmp.ne.s32.totalorder %s37, %s53
    %p55 = scmp.eq.s32.totalorder %s17, 0
    %p56 = por %p54, %p55
    %s58 = sadd.s32 %s57, 1
    %p61 = scmp.eq.s32.totalorder %s11, 1
    %p62 = scmp.ne.s32.totalorder %s57, %s59
    %p63 = scmp.eq.s32.totalorder %s11, 0
    %p64 = por %p62, %p63
    %p65 = scmp.ne.s32.totalorder %s57, %s59
    %p66 = scmp.eq.s32.totalorder %s16, 1
    %p67 = por %p65, %p66
    %p68 = scmp.ne.s32.totalorder %s59, %s60
    %p69 = scmp.eq.s32.totalorder %s16, 0
    %p70 = por %p68, %p69
    %p71 = scmp.ne.s32.totalorder %s59, %s60
    %p72 = scmp.eq.s32.totalorder %s17, 1
    %p73 = por %p71, %p72
    %p75 = scmp.ne.s32.totalorder %s60, %s74
    %p76 = scmp.eq.s32.totalorder %s17, 0
    %p77 = por %p75, %p76
    %s78 = ssub.s32 %s19, %s26
    %p79 = scmp.eq.s32.totalorder %s78, 0
    %s81 = sadd.s32 %s80, 1
    %s82 = scalar_select %p79, %s80, %s81
    %p85 = pneg %p79
    %p86 = scmp.eq.s32.totalorder %s11, 1
    %p87 = por %p85, %p86
    %p88 = scmp.ne.s32.totalorder %s80, %s83
    %p89 = scmp.eq.s32.totalorder %s11, 0
    %p90 = por %p88, %p89
    %p91 = scmp.ne.s32.totalorder %s80, %s83
    %p92 = scmp.eq.s32.totalorder %s16, 1
    %p93 = por %p91, %p92
    %p94 = scmp.ne.s32.totalorder %s83, %s84
    %p95 = scmp.eq.s32.totalorder %s16, 0
    %p96 = por %p94, %p95
    %p97 = scmp.ne.s32.totalorder %s83, %s84
    %p98 = scmp.eq.s32.totalorder %s17, 1
    %p99 = por %p97, %p98
    %p101 = scmp.ne.s32.totalorder %s84, %s100
    %p102 = scmp.eq.s32.totalorder %s17, 0
    %p103 = por %p101, %p102
    %s104 = ssub.s32 %s18, %s30
    %s105 = ssub.s32 %s19, %s26
    %s106 = sor.u32 %s104, %s105
    %p107 = scmp.eq.s32.totalorder %s106, 0
    %s109 = sadd.s32 %s108, 1
    %s110 = scalar_select %p107, %s108, %s109
    %p113 = pneg %p107
    %p114 = scmp.eq.s32.totalorder %s11, 1
    %p115 = por %p113, %p114
    %p116 = scmp.ne.s32.totalorder %s108, %s111
    %p117 = scmp.eq.s32.totalorder %s11, 0
    %p118 = por %p116, %p117
    %p119 = scmp.ne.s32.totalorder %s108, %s111
    %p120 = scmp.eq.s32.totalorder %s16, 1
    %p121 = por %p119, %p120
    %p122 = scmp.ne.s32.totalorder %s111, %s112
    %p123 = scmp.eq.s32.totalorder %s16, 0
    %p124 = por %p122, %p123
    %p125 = scmp.ne.s32.totalorder %s111, %s112
    %p126 = scmp.eq.s32.totalorder %s17, 1
    %p127 = por %p125, %p126
    %p129 = scmp.ne.s32.totalorder %s112, %s128
    %p130 = scmp.eq.s32.totalorder %s17, 0
    %p131 = por %p129, %p130
    %s132 = ssub.s32 %s18, %s30
    %s133 = ssub.s32 %s19, %s26
    %s134 = sor.u32 %s132, %s133
    %p135 = scmp.eq.s32.totalorder %s134, 0
    %s137 = sadd.s32 %s136, 1
    %s138 = scalar_select %p135, %s136, %s137
    %p141 = pneg %p135
    %p142 = scmp.eq.s32.totalorder %s11, 1
    %p143 = por %p141, %p142
    %p144 = scmp.ne.s32.totalorder %s136, %s139
    %p145 = scmp.eq.s32.totalorder %s11, 0
    %p146 = por %p144, %p145
    %p147 = scmp.ne.s32.totalorder %s136, %s139
    %p148 = scmp.eq.s32.totalorder %s16, 1
    %p149 = por %p147, %p148
    %p150 = scmp.ne.s32.totalorder %s139, %s140
    %p151 = scmp.eq.s32.totalorder %s16, 0
    %p152 = por %p150, %p151
    %p153 = scmp.ne.s32.totalorder %s139, %s140
    %p154 = scmp.eq.s32.totalorder %s17, 1
    %p155 = por %p153, %p154
    %p157 = scmp.ne.s32.totalorder %s140, %s156
    %p158 = scmp.eq.s32.totalorder %s17, 0
    %p159 = por %p157, %p158
    %p160 = scmp.le.s32.totalorder 1, %s11
    %p161 = scmp.lt.s32.totalorder %s11, 3
    %p162 = pnand %p160, %p161
    %p163 = pneg %p162
    // Predicated region
    $region9: #{conv_block_forward.2} parent=5 // pred_check
      _
    $region10: #{conv_block_forward.2} parent=5 // pred_check_branch
      %165 = sbr.rel (%p162) target = $region12
    $region11: #{conv_block_forward.2} parent=5 // pred_region
      %s166 = ssub.s32 %s11, 1
      // Predicated region
      $region13: #{conv_block_forward.2} parent=11 // pred_check
        %p167 = pneg %p70
      $region14: #{conv_block_forward.2} parent=11 // pred_check_branch
        %169 = sbr.rel (%p167) target = $region16
      $region15: #{conv_block_forward.2} parent=11 // pred_region
        _
      $region16: #{conv_block_forward.2} parent=11 // pred_fallthru
        _
      // Predicated region
      $region17: #{conv_block_forward.2} parent=11 // pred_check
        %p170 = pneg %p96
      $region18: #{conv_block_forward.2} parent=11 // pred_check_branch
        %172 = sbr.rel (%p170) target = $region20
      $region19: #{conv_block_forward.2} parent=11 // pred_region
        %s173 = smul.u32 16, %s21
        %p174 = scmp.lt.s32.totalorder %s173, 15
        %s175 = scalar_select %p174, %s173, 15
        %s176 = smul.addr %s175, 8
        %s177 = scalar_lea.vmem %s2, %s176
        %s178 = smul.u32 16, %s21
      $region20: #{conv_block_forward.2} parent=11 // pred_fallthru
        _
    $region12: #{conv_block_forward.2} parent=5 // pred_fallthru
      _
    %p179 = scmp.lt.s32.totalorder %s11, 2
    // Predicated region
    $region21: #{conv_block_forward.2} parent=5 // pred_check
      %p180 = pneg %p179
    $region22: #{conv_block_forward.2} parent=5 // pred_check_branch
      %182 = sbr.rel (%p180) target = $region24
    $region23: #{conv_block_forward.2} parent=5 // pred_region
      // Predicated region
      $region25: #{conv_block_forward.2} parent=23 // pred_check
        %p183 = pneg %p43
      $region26: #{conv_block_forward.2} parent=23 // pred_check_branch
        %185 = sbr.rel (%p183) target = $region28
      $region27: #{conv_block_forward.2} parent=23 // pred_region
        %p186 = scmp.lt.s32.totalorder %s18, 1
        %s187 = scalar_select %p186, %s18, 1
        %s188 = smul.addr %s187, 2
        %s189 = smul.addr %s188, 4
        %s190 = scalar_lea.vmem %s0, %s189
      $region28: #{conv_block_forward.2} parent=23 // pred_fallthru
        _
    $region24: #{conv_block_forward.2} parent=5 // pred_fallthru
      _
    %p191 = scmp.le.s32.totalorder 1, %s11
    %p192 = scmp.lt.s32.totalorder %s11, 3
    %p193 = pnand %p191, %p192
    %p194 = pneg %p193
    // Predicated region
    $region29: #{conv_block_forward.2} parent=5 // pred_check
      _
    $region30: #{conv_block_forward.2} parent=5 // pred_check_branch
      %196 = sbr.rel (%p193) target = $region32
    $region31: #{conv_block_forward.2} parent=5 // pred_region
      %s197 = ssub.s32 %s11, 1
      %p198 = scmp.lt.s32.totalorder %s20, 1
      %s199 = scalar_select %p198, %s20, 1
      %s200 = smul.addr %s199, 2
      %s201 = smul.addr %s200, 4
      %s202 = scalar_lea.vmem %s0, %s201
      %p203 = pneg %p49
      %p204 = pneg %p46
      %p205 = pneg %p70
      %p206 = pneg %p67
      %s207 = smul.u32 16, %s21
      %p208 = scmp.lt.s32.totalorder %s207, 15
      %s209 = scalar_select %p208, %s207, 15
      %s210 = smul.addr %s209, 8
      %s211 = scalar_lea.vmem %s2, %s210
      %p212 = pneg %p96
      %p213 = pneg %p93
      %p214 = pneg %p124
      %p215 = pneg %p121
      %s216 = smul.u32 16, %s21
      %p217 = scmp.lt.s32.totalorder %s20, 1
      %s218 = scalar_select %p217, %s20, 1
      %p219 = scmp.lt.s32.totalorder %s216, 15
      %s220 = scalar_select %p219, %s216, 15
      %s221 = smul.addr %s218, 16
      %s222 = sadd.s32 %s220, %s221
      %s223 = smul.addr %s222, 8
      %s224 = scalar_lea.vmem %s3, %s223
      %p225 = pneg %p152
      %p226 = pneg %p149
      %s227 = smul.u32 16, %s21
      %p228 = scmp.lt.s32.totalorder %s20, 1
      %s229 = scalar_select %p228, %s20, 1
      %p230 = scmp.lt.s32.totalorder %s227, 15
      %s231 = scalar_select %p230, %s227, 15
      %s232 = smul.addr %s229, 16
      %s233 = sadd.s32 %s231, %s232
      %s234 = smul.addr %s233, 8
      %s235 = scalar_lea.vmem %s4, %s234
      %p236 = scmp.lt.s32.totalorder %s20, 1
      %s237 = scalar_select %p236, %s20, 1
      %s238 = smul.addr %s237, 2
      %s239 = smul.addr %s238, 4
      %s240 = scalar_lea.vmem %s0, %s239
      %s241 = smul.u32 16, %s21
      %p242 = scmp.lt.s32.totalorder %s241, 15
      %s243 = scalar_select %p242, %s241, 15
      %s244 = smul.addr %s243, 8
      %s245 = scalar_lea.vmem %s2, %s244
      %s246 = smul.u32 16, %s21
      %s247 = smul.u32 16, %s21
      %p248 = scmp.lt.s32.totalorder %s20, 1
      %s249 = scalar_select %p248, %s20, 1
      %p250 = scmp.lt.s32.totalorder %s247, 15
      %s251 = scalar_select %p250, %s247, 15
      %s252 = smul.addr %s249, 16
      %s253 = sadd.s32 %s251, %s252
      %s254 = smul.addr %s253, 8
      %s255 = scalar_lea.vmem %s3, %s254
      %s256 = smul.u32 16, %s21
      %s257 = smul.u32 16, %s21
      %p258 = scmp.lt.s32.totalorder %s20, 1
      %s259 = scalar_select %p258, %s20, 1
      %p260 = scmp.lt.s32.totalorder %s257, 15
      %s261 = scalar_select %p260, %s257, 15
      %s262 = smul.addr %s259, 16
      %s263 = sadd.s32 %s261, %s262
      %s264 = smul.addr %s263, 8
      %s265 = scalar_lea.vmem %s4, %s264
      %s266 = smul.u32 16, %s21
      %267 = vst [vmem:[#allocation2] sm:$0xf] 0.0
      %vm268 = vcmask 134144
      %269 = vst.msk [vmem:[#allocation2 + $0xc] sm:$0xf] %vm268, 0.0
      %v270 = vld [vmem:[%s240] sm:$0xff]
      %271 = vst [vmem:[#allocation2 + $0x4] sm:$0xff] %v270
      %v272 = vld [vmem:[%s1] ss:$2 sm:$0x3]
      %s273 = scalar_lea.vmem %s1, 1
      %v274 = vld [vmem:[%s273] ss:$2 sm:$0x3]
      %v275 = vld [vmem:[#allocation2] sm:$0xff]
      %v276 = vld [vmem:[#allocation2 + $0x8] sm:$0xf]
      %v278 = vlaneseq
      %v279 = vshrl.u32 %v278, 7
      %v280 = vsub.s32 0, %v279
      %v281 = vrot.slane %v272, %v280
      %v282 = vlaneseq
      %v283 = vshrl.u32 %v282, 7
      %v284 = vsub.s32 1, %v283
      %v285 = vrot.slane %v272, %v284
      %v286 = vcombine.low %v281, %v285
      %287 = vrot.lane.b32.xlu0 %v286, 111
      %v288 = vpop.permute.xlu0 %287
      %v289 = vrot.slane %v288, 4
      %vm290 = vcmask 908288
      %v291 = vsel %vm290, %v289, %v288
      %v294 = vmul.f32 %v275, %v291
      %v295 = vmul.f32 %v276, %v289
      %v297 = vlaneseq
      %v298 = vshrl.u32 %v297, 7
      %v299 = vsub.s32 0, %v298
      %v300 = vrot.slane %v274, %v299
      %v301 = vlaneseq
      %v302 = vshrl.u32 %v301, 7
      %v303 = vsub.s32 1, %v302
      %v304 = vrot.slane %v274, %v303
      %v305 = vcombine.low %v300, %v304
      %306 = vrot.lane.b32.xlu0 %v305, 113
      %v307 = vpop.permute.xlu0 %306
      %v308 = vrot.slane %v307, 4
      %vm309 = vcmask 924672
      %v310 = vsel %vm309, %v308, %v307
      %v313 = vmul.f32 %v275, %v310
      %v314 = vmul.f32 %v276, %v308
      %315 = vrot.lane.b32.xlu0 %v286, 127
      %v316 = vpop.permute.xlu0 %315
      %v317 = vrot.slane %v316, 4
      %vm318 = vcmask 1039360
      %v319 = vsel %vm318, %v317, %v316
      %v322 = vmul.f32 %v275, %v319
      %v323 = vmul.f32 %v276, %v317
      %v324 = vld [vmem:[#allocation2 + $0x4] sm:$0xff]
      %v325 = vld [vmem:[#allocation2 + $0xc] sm:$0xf]
      %326 = vrot.lane.b32.xlu0 %v305, 1
      %v327 = vpop.permute.xlu0 %326
      %v328 = vrot.slane %v327, 4
      %vm329 = vcmask 7168
      %v330 = vsel %vm329, %v328, %v327
      %v333 = vmul.f32 %v324, %v330
      %v334 = vmul.f32 %v325, %v328
      %335 = vrot.lane.b32.xlu0 %v286, 15
      %v336 = vpop.permute.xlu0 %335
      %v337 = vrot.slane %v336, 4
      %vm338 = vcmask 121856
      %v339 = vsel %vm338, %v337, %v336
      %v342 = vmul.f32 %v324, %v339
      %v343 = vmul.f32 %v325, %v337
      %344 = vrot.lane.b32.xlu0 %v305, 17
      %v345 = vpop.permute.xlu0 %344
      %v346 = vrot.slane %v345, 4
      %vm347 = vcmask 138240
      %v348 = vsel %vm347, %v346, %v345
      %v351 = vmul.f32 %v324, %v348
      %v352 = vmul.f32 %v325, %v346
      %v354 = vcombine.high %v294, %v294
      %v358 = vcombine.low %v275, %v275
      %v359 = vcombine.low %v276, %v276
      %360 = vrot.lane.b32.xlu0 %v358, 127
      %v361 = vpop.permute.xlu0 %360
      %362 = vrot.lane.b32.xlu0 %v275, 127
      %v363 = vpop.permute.xlu0 %362
      %364 = vrot.lane.b32.xlu0 %v359, 127
      %v365 = vpop.permute.xlu0 %364
      %v366 = vsel %vm318, %v361, %v363
      %v367 = vsel %vm318, %v363, %v365
      %v373 = vcombine.high %v313, %v313
      %374 = vrot.lane.b32.xlu0 %v313, 126
      %v375 = vpop.permute.xlu0 %374
      %376 = vrot.lane.b32.xlu0 %v373, 126
      %v377 = vpop.permute.xlu0 %376
      %378 = vrot.lane.b32.xlu0 %v314, 126
      %v379 = vpop.permute.xlu0 %378
      %vm380 = vcmask 1031168
      %v381 = vsel %vm380, %v375, %v377
      %v382 = vsel %vm380, %v377, %v379
      %v388 = vcombine.low %v322, %v322
      %v389 = vcombine.low %v323, %v323
      %390 = vrot.lane.b32.xlu0 %v388, 112
      %v391 = vpop.permute.xlu0 %390
      %392 = vrot.lane.b32.xlu0 %v322, 112
      %v393 = vpop.permute.xlu0 %392
      %394 = vrot.lane.b32.xlu0 %v389, 112
      %v395 = vpop.permute.xlu0 %394
      %vm396 = vcmask 916480
      %v397 = vsel %vm396, %v391, %v393
      %v398 = vsel %vm396, %v393, %v395
      %v403 = vcombine.high %v324, %v324
      %404 = vrot.lane.b32.xlu0 %v324, 111
      %v405 = vpop.permute.xlu0 %404
      %406 = vrot.lane.b32.xlu0 %v403, 111
      %v407 = vpop.permute.xlu0 %406
      %v408 = vsel %vm290, %v405, %v407
      %v414 = vcombine.low %v333, %v333
      %v415 = vcombine.low %v334, %v334
      %416 = vrot.lane.b32.xlu0 %v414, 110
      %v417 = vpop.permute.xlu0 %416
      %418 = vrot.lane.b32.xlu0 %v333, 110
      %v419 = vpop.permute.xlu0 %418
      %420 = vrot.lane.b32.xlu0 %v415, 110
      %v421 = vpop.permute.xlu0 %420
      %vm422 = vcmask 900096
      %v423 = vsel %vm422, %v417, %v419
      %v424 = vsel %vm422, %v419, %v421
      %v430 = vcombine.high %v342, %v342
      %431 = vrot.lane.b32.xlu0 %v342, 96
      %v432 = vpop.permute.xlu0 %431
      %433 = vrot.lane.b32.xlu0 %v430, 96
      %v434 = vpop.permute.xlu0 %433
      %435 = vrot.lane.b32.xlu0 %v343, 96
      %v436 = vpop.permute.xlu0 %435
      %vm437 = vcmask 785408
      %v438 = vsel %vm437, %v432, %v434
      %v439 = vsel %vm437, %v434, %v436
      %v444 = vcombine.low %v324, %v324
      %v445 = vcombine.low %v325, %v325
      %446 = vrot.lane.b32.xlu0 %v444, 95
      %v447 = vpop.permute.xlu0 %446
      %448 = vrot.lane.b32.xlu0 %v324, 95
      %v449 = vpop.permute.xlu0 %448
      %450 = vrot.lane.b32.xlu0 %v445, 95
      %v451 = vpop.permute.xlu0 %450
      %vm452 = vcmask 777216
      %v453 = vsel %vm452, %v447, %v449
      %v454 = vsel %vm452, %v449, %v451
      %v460 = vcombine.high %v351, %v351
      %461 = vrot.lane.b32.xlu0 %v351, 94
      %v462 = vpop.permute.xlu0 %461
      %463 = vrot.lane.b32.xlu0 %v460, 94
      %v464 = vpop.permute.xlu0 %463
      %465 = vrot.lane.b32.xlu0 %v352, 94
      %v466 = vpop.permute.xlu0 %465
      %vm467 = vcmask 769024
      %v468 = vsel %vm467, %v462, %v464
      %v469 = vsel %vm467, %v464, %v466
      %vm470 = vcmask 1043456
      %v471 = vsel %vm470, %v294, %v366
      %v472 = vsel %vm470, %v354, %v367
      %v473 = vsel %vm470, %v295, %v365
      %v474 = vsel %vm470, %v381, %v397
      %v475 = vsel %vm470, %v382, %v398
      %v476 = vsel %vm470, %v379, %v395
      %v477 = vsel %vm470, %v405, %v417
      %v478 = vsel %vm470, %v408, %v423
      %v479 = vsel %vm470, %v407, %v424
      %v480 = vsel %vm470, %v432, %v447
      %v481 = vsel %vm470, %v438, %v453
      %v482 = vsel %vm470, %v439, %v454
      %v483 = vld [vmem:[%s245] sm:$0xff]
      %v484 = vld [vmem:[%s245 + $0x8] sm:$0xff]
      %v485 = vld [vmem:[%s245 + $0x10] sm:$0xff]
      %v486 = vld [vmem:[%s245 + $0x18] sm:$0xff]
      %v487 = vld [vmem:[%s245 + $0x20] sm:$0xff]
      %v488 = vld [vmem:[%s245 + $0x28] sm:$0xff]
      %v489 = vld [vmem:[%s245 + $0x30] sm:$0xff]
      %v490 = vld [vmem:[%s245 + $0x38] sm:$0xff]
      %v491 = vld [vmem:[%s245 + $0x40] sm:$0xff]
      %v492 = vld [vmem:[%s245 + $0x48] sm:$0xff]
      %v493 = vld [vmem:[%s245 + $0x50] sm:$0xff]
      %v494 = vld [vmem:[%s245 + $0x58] sm:$0xff]
      %v495 = vld [vmem:[%s245 + $0x60] sm:$0xff]
      %v496 = vld [vmem:[%s245 + $0x68] sm:$0xff]
      %v497 = vld [vmem:[%s245 + $0x70] sm:$0xff]
      %v498 = vld [vmem:[%s245 + $0x78] sm:$0xff]
      %511 = vrot.lane.b32.xlu0 %v471, 17
      %v512 = vpop.permute.xlu0 %511
      %513 = vrot.lane.b32.xlu0 %v472, 17
      %v514 = vpop.permute.xlu0 %513
      %515 = vrot.lane.b32.xlu0 %v473, 17
      %v516 = vpop.permute.xlu0 %515
      %517 = vrot.lane.b32.xlu0 %v474, 17
      %v518 = vpop.permute.xlu0 %517
      %519 = vrot.lane.b32.xlu0 %v475, 17
      %v520 = vpop.permute.xlu0 %519
      %521 = vrot.lane.b32.xlu0 %v476, 17
      %v522 = vpop.permute.xlu0 %521
      %523 = vrot.lane.b32.xlu0 %v477, 17
      %v524 = vpop.permute.xlu0 %523
      %525 = vrot.lane.b32.xlu0 %v478, 17
      %v526 = vpop.permute.xlu0 %525
      %527 = vrot.lane.b32.xlu0 %v479, 17
      %v528 = vpop.permute.xlu0 %527
      %529 = vrot.lane.b32.xlu0 %v480, 17
      %v530 = vpop.permute.xlu0 %529
      %531 = vrot.lane.b32.xlu0 %v481, 17
      %v532 = vpop.permute.xlu0 %531
      %533 = vrot.lane.b32.xlu0 %v482, 17
      %v534 = vpop.permute.xlu0 %533
      %535 = vrot.lane.b32.xlu0 %v462, 17
      %v536 = vpop.permute.xlu0 %535
      %537 = vrot.lane.b32.xlu0 %v468, 17
      %v538 = vpop.permute.xlu0 %537
      %539 = vrot.lane.b32.xlu0 %v469, 17
      %v540 = vpop.permute.xlu0 %539
      %v541 = vsel %vm347, %v512, %v514
      %v542 = vsel %vm347, %v514, %v516
      %v543 = vsel %vm347, %v518, %v520
      %v544 = vsel %vm347, %v520, %v522
      %v545 = vsel %vm347, %v524, %v526
      %v546 = vsel %vm347, %v526, %v528
      %v547 = vsel %vm347, %v530, %v532
      %v548 = vsel %vm347, %v532, %v534
      %v549 = vsel %vm347, %v536, %v538
      %v550 = vsel %vm347, %v538, %v540
      %vm559 = vcmask 293888
      %v561 = vsel %vm559, %v483, 0
      %v564 = vsel %vm559, %v484, 0
      %v567 = vsel %vm559, %v485, 0
      %v570 = vsel %vm559, %v486, 0
      %v573 = vsel %vm559, %v487, 0
      %v576 = vsel %vm559, %v488, 0
      %v579 = vsel %vm559, %v489, 0
      %v582 = vsel %vm559, %v490, 0
      %v585 = vsel %vm559, %v491, 0
      %v588 = vsel %vm559, %v492, 0
      %v591 = vsel %vm559, %v493, 0
      %v594 = vsel %vm559, %v494, 0
      %v597 = vsel %vm559, %v495, 0
      %v600 = vsel %vm559, %v496, 0
      %v603 = vsel %vm559, %v497, 0
      %v606 = vsel %vm559, %v498, 0
      %v608 = vsel %vm470, %v549, 0
      %v610 = vsel %vm470, %v550, 0
      %612 = vmatprep.subr.mxu0 %v542
      %613 = vmatpush1.msra.mxu0 %v541
      %614 = vmatprep.subr.mxu0 %v544
      %615 = vmatpush1.msra.mxu0 %v543
      %616 = vmatprep.subr.mxu0 %v546
      %617 = vmatpush1.msra.mxu0 %v545
      %618 = vmatprep.subr.mxu0 %v548
      %619 = vmatpush1.msra.mxu0 %v547
      %620 = vmatprep.subr.mxu0 %v610
      %621 = vmatpush1.msra.mxu0 %v608
      %622 = vmatprep.subr.mxu0 0.0
      %623 = vmatpush1.msra.mxu0 0.0
      %624 = vmatprep.subr.mxu0 0.0
      %625 = vmatpush1.msra.mxu0 0.0
      %626 = vmatprep.subr.mxu0 0.0
      %627 = vmatpush1.msra.mxu0 0.0
      %628 = vmatprep.subr.mxu0 0.0
      %629 = vmatpush1.msra.mxu0 0.0
      %630 = vmatprep.subr.mxu0 0.0
      %631 = vmatpush1.msra.mxu0 0.0
      %632 = vmatprep.subr.mxu0 0.0
      %633 = vmatpush1.msra.mxu0 0.0
      %634 = vmatprep.subr.mxu0 0.0
      %635 = vmatpush1.msra.mxu0 0.0
      %636 = vmatprep.subr.mxu0 0.0
      %637 = vmatpush1.msra.mxu0 0.0
      %638 = vmatprep.subr.mxu0 0.0
      %639 = vmatpush1.msra.mxu0 0.0
      %640 = vmatprep.subr.mxu0 0.0
      %641 = vmatpush1.msra.mxu0 0.0
      %642 = vmatprep.subr.mxu0 0.0
      %643 = vmatpush1.msra.mxu0 0.0
      %644 = vmatprep.subr.mxu0 0.0
      %645 = vmatpush1.msra.mxu0 0.0
      %646 = vmatprep.subr.mxu0 0.0
      %647 = vmatpush1.msra.mxu0 0.0
      %648 = vmatprep.subr.mxu0 0.0
      %649 = vmatpush1.msra.mxu0 0.0
      %650 = vmatprep.subr.mxu0 0.0
      %651 = vmatpush1.msra.mxu0 0.0
      %652 = vmatprep.subr.mxu0 0.0
      %653 = vmatpush1.msra.mxu0 0.0
      %654 = vmatprep.subr.mxu0 0.0
      %655 = vmatpush1.msra.mxu0 0.0
      %656 = vmatprep.subr.mxu0 0.0
      %657 = vmatpush1.msra.mxu0 0.0
      %658 = vmatprep.subr.mxu0 0.0
      %659 = vmatpush1.msra.mxu0 0.0
      %660 = vmatprep.subr.mxu0 0.0
      %661 = vmatpush1.msra.mxu0 0.0
      %662 = vmatprep.subr.mxu0 0.0
      %663 = vmatpush1.msra.mxu0 0.0
      %664 = vmatprep.subr.mxu0 0.0
      %665 = vmatpush1.msra.mxu0 0.0
      %666 = vmatprep.subr.mxu0 0.0
      %667 = vmatpush1.msra.mxu0 0.0
      %668 = vmatprep.subr.mxu0 0.0
      %669 = vmatpush1.msra.mxu0 0.0
      %670 = vmatprep.subr.mxu0 0.0
      %671 = vmatpush1.msra.mxu0 0.0
      %672 = vmatprep.subr.mxu0 0.0
      %673 = vmatpush1.msra.mxu0 0.0
      %674 = vmatprep.subr.mxu0 0.0
      %675 = vmatpush1.msra.mxu0 0.0
      %676 = vmatprep.mubr.f32.mxu0 0.0
      %677 = vmatmul.mubr.f32.gmra.mrb[0].mxu0 %v561
      %v678 = vpop.f32.mrb[0].mxu0
      %v679 = vadd.f32 0.0, %v678
      %v680 = vpop.f32.mrb[0].mxu0
      %v681 = vadd.f32 0.0, %v680
      %682 = vmatprep.mubr.f32.mxu0 0.0
      %683 = vmatmul.mubr.f32.gmra.mrb[0].mxu0 %v564
      %v684 = vpop.f32.mrb[0].mxu0
      %v685 = vadd.f32 0.0, %v684
      %v686 = vpop.f32.mrb[0].mxu0
      %v687 = vadd.f32 0.0, %v686
      %688 = vmatprep.mubr.f32.mxu0 0.0
      %689 = vmatmul.mubr.f32.gmra.mrb[0].mxu0 %v567
      %v690 = vpop.f32.mrb[0].mxu0
      %v691 = vadd.f32 0.0, %v690
      %v692 = vpop.f32.mrb[0].mxu0
      %v693 = vadd.f32 0.0, %v692
      %694 = vmatprep.mubr.f32.mxu0 0.0
      %695 = vmatmul.mubr.f32.gmra.mrb[0].mxu0 %v570
      %v696 = vpop.f32.mrb[0].mxu0
      %v697 = vadd.f32 0.0, %v696
      %v698 = vpop.f32.mrb[0].mxu0
      %v699 = vadd.f32 0.0, %v698
      %700 = vmatprep.mubr.f32.mxu0 0.0
      %701 = vmatmul.mubr.f32.gmra.mrb[0].mxu0 %v573
      %v702 = vpop.f32.mrb[0].mxu0
      %v703 = vadd.f32 0.0, %v702
      %v704 = vpop.f32.mrb[0].mxu0
      %v705 = vadd.f32 0.0, %v704
      %706 = vmatprep.mubr.f32.mxu0 0.0
      %707 = vmatmul.mubr.f32.gmra.mrb[0].mxu0 %v576
      %v708 = vpop.f32.mrb[0].mxu0
      %v709 = vadd.f32 0.0, %v708
      %v710 = vpop.f32.mrb[0].mxu0
      %v711 = vadd.f32 0.0, %v710
      %712 = vmatprep.mubr.f32.mxu0 0.0
      %713 = vmatmul.mubr.f32.gmra.mrb[0].mxu0 %v579
      %v714 = vpop.f32.mrb[0].mxu0
      %v715 = vadd.f32 0.0, %v714
      %v716 = vpop.f32.mrb[0].mxu0
      %v717 = vadd.f32 0.0, %v716
      %718 = vmatprep.mubr.f32.mxu0 0.0
      %719 = vmatmul.mubr.f32.gmra.mrb[0].mxu0 %v582
      %v720 = vpop.f32.mrb[0].mxu0
      %v721 = vadd.f32 0.0, %v720
      %v722 = vpop.f32.mrb[0].mxu0
      %v723 = vadd.f32 0.0, %v722
      %724 = vmatprep.mubr.f32.mxu0 0.0
      %725 = vmatmul.mubr.f32.gmra.mrb[0].mxu0 %v585
      %v726 = vpop.f32.mrb[0].mxu0
      %v727 = vadd.f32 0.0, %v726
      %v728 = vpop.f32.mrb[0].mxu0
      %v729 = vadd.f32 0.0, %v728
      %730 = vmatprep.mubr.f32.mxu0 0.0
      %731 = vmatmul.mubr.f32.gmra.mrb[0].mxu0 %v588
      %v732 = vpop.f32.mrb[0].mxu0
      %v733 = vadd.f32 0.0, %v732
      %v734 = vpop.f32.mrb[0].mxu0
      %v735 = vadd.f32 0.0, %v734
      %736 = vmatprep.mubr.f32.mxu0 0.0
      %737 = vmatmul.mubr.f32.gmra.mrb[0].mxu0 %v591
      %v738 = vpop.f32.mrb[0].mxu0
      %v739 = vadd.f32 0.0, %v738
      %v740 = vpop.f32.mrb[0].mxu0
      %v741 = vadd.f32 0.0, %v740
      %742 = vmatprep.mubr.f32.mxu0 0.0
      %743 = vmatmul.mubr.f32.gmra.mrb[0].mxu0 %v594
      %v744 = vpop.f32.mrb[0].mxu0
      %v745 = vadd.f32 0.0, %v744
      %v746 = vpop.f32.mrb[0].mxu0
      %v747 = vadd.f32 0.0, %v746
      %748 = vmatprep.mubr.f32.mxu0 0.0
      %749 = vmatmul.mubr.f32.gmra.mrb[0].mxu0 %v597
      %v750 = vpop.f32.mrb[0].mxu0
      %v751 = vadd.f32 0.0, %v750
      %v752 = vpop.f32.mrb[0].mxu0
      %v753 = vadd.f32 0.0, %v752
      %754 = vmatprep.mubr.f32.mxu0 0.0
      %755 = vmatmul.mubr.f32.gmra.mrb[0].mxu0 %v600
      %v756 = vpop.f32.mrb[0].mxu0
      %v757 = vadd.f32 0.0, %v756
      %v758 = vpop.f32.mrb[0].mxu0
      %v759 = vadd.f32 0.0, %v758
      %760 = vmatprep.mubr.f32.mxu0 0.0
      %761 = vmatmul.mubr.f32.gmra.mrb[0].mxu0 %v603
      %v762 = vpop.f32.mrb[0].mxu0
      %v763 = vadd.f32 0.0, %v762
      %v764 = vpop.f32.mrb[0].mxu0
      %v765 = vadd.f32 0.0, %v764
      %766 = vmatprep.mubr.f32.mxu0 0.0
      %767 = vmatmul.mubr.f32.gmra.mrb[0].mxu0 %v606
      %v768 = vpop.f32.mrb[0].mxu0
      %v769 = vadd.f32 0.0, %v768
      %v770 = vpop.f32.mrb[0].mxu0
      %v771 = vadd.f32 0.0, %v770
      %772 = vdwg.mxu0
      %v773 = vadd.f32 %v679, %v681
      %774 = vadd.xlane.f32.xlu0 %v773
      %v775 = vpop.xlane.xlu0 %774
      %v776 = vadd.f32 %v685, %v687
      %777 = vadd.xlane.f32.xlu0 %v776
      %v778 = vpop.xlane.xlu0 %777
      %v779 = vadd.f32 %v691, %v693
      %780 = vadd.xlane.f32.xlu0 %v779
      %v781 = vpop.xlane.xlu0 %780
      %v782 = vadd.f32 %v697, %v699
      %783 = vadd.xlane.f32.xlu0 %v782
      %v784 = vpop.xlane.xlu0 %783
      %v785 = vadd.f32 %v703, %v705
      %786 = vadd.xlane.f32.xlu0 %v785
      %v787 = vpop.xlane.xlu0 %786
      %v788 = vadd.f32 %v709, %v711
      %789 = vadd.xlane.f32.xlu0 %v788
      %v790 = vpop.xlane.xlu0 %789
      %v791 = vadd.f32 %v715, %v717
      %792 = vadd.xlane.f32.xlu0 %v791
      %v793 = vpop.xlane.xlu0 %792
      %v794 = vadd.f32 %v721, %v723
      %795 = vadd.xlane.f32.xlu0 %v794
      %v796 = vpop.xlane.xlu0 %795
      %v797 = vadd.f32 %v727, %v729
      %798 = vadd.xlane.f32.xlu0 %v797
      %v799 = vpop.xlane.xlu0 %798
      %v800 = vadd.f32 %v733, %v735
      %801 = vadd.xlane.f32.xlu0 %v800
      %v802 = vpop.xlane.xlu0 %801
      %v803 = vadd.f32 %v739, %v741
      %804 = vadd.xlane.f32.xlu0 %v803
      %v805 = vpop.xlane.xlu0 %804
      %v806 = vadd.f32 %v745, %v747
      %807 = vadd.xlane.f32.xlu0 %v806
      %v808 = vpop.xlane.xlu0 %807
      %v809 = vadd.f32 %v751, %v753
      %810 = vadd.xlane.f32.xlu0 %v809
      %v811 = vpop.xlane.xlu0 %810
      %v812 = vadd.f32 %v757, %v759
      %813 = vadd.xlane.f32.xlu0 %v812
      %v814 = vpop.xlane.xlu0 %813
      %v815 = vadd.f32 %v763, %v765
      %816 = vadd.xlane.f32.xlu0 %v815
      %v817 = vpop.xlane.xlu0 %816
      %v818 = vadd.f32 %v769, %v771
      %819 = vadd.xlane.f32.xlu0 %v818
      %v820 = vpop.xlane.xlu0 %819
      %821 = vst.msk [vmem:[%s255] sm:$0xff] %vm329, %v775
      %822 = vst.msk [vmem:[%s255 + $0x8] sm:$0xff] %vm329, %v778
      %823 = vst.msk [vmem:[%s255 + $0x10] sm:$0xff] %vm329, %v781
      %824 = vst.msk [vmem:[%s255 + $0x18] sm:$0xff] %vm329, %v784
      %825 = vst.msk [vmem:[%s255 + $0x20] sm:$0xff] %vm329, %v787
      %826 = vst.msk [vmem:[%s255 + $0x28] sm:$0xff] %vm329, %v790
      %827 = vst.msk [vmem:[%s255 + $0x30] sm:$0xff] %vm329, %v793
      %828 = vst.msk [vmem:[%s255 + $0x38] sm:$0xff] %vm329, %v796
      %829 = vst.msk [vmem:[%s255 + $0x40] sm:$0xff] %vm329, %v799
      %830 = vst.msk [vmem:[%s255 + $0x48] sm:$0xff] %vm329, %v802
      %831 = vst.msk [vmem:[%s255 + $0x50] sm:$0xff] %vm329, %v805
      %832 = vst.msk [vmem:[%s255 + $0x58] sm:$0xff] %vm329, %v808
      %833 = vst.msk [vmem:[%s255 + $0x60] sm:$0xff] %vm329, %v811
      %834 = vst.msk [vmem:[%s255 + $0x68] sm:$0xff] %vm329, %v814
      %835 = vst.msk [vmem:[%s255 + $0x70] sm:$0xff] %vm329, %v817
      %836 = vst.msk [vmem:[%s255 + $0x78] sm:$0xff] %vm329, %v820
      %v837 = vmul.f32 %v679, %v679
      %v838 = vmul.f32 %v681, %v681
      %v839 = vmul.f32 %v685, %v685
      %v840 = vmul.f32 %v687, %v687
      %v841 = vmul.f32 %v691, %v691
      %v842 = vmul.f32 %v693, %v693
      %v843 = vmul.f32 %v697, %v697
      %v844 = vmul.f32 %v699, %v699
      %v845 = vmul.f32 %v703, %v703
      %v846 = vmul.f32 %v705, %v705
      %v847 = vmul.f32 %v709, %v709
      %v848 = vmul.f32 %v711, %v711
      %v849 = vmul.f32 %v715, %v715
      %v850 = vmul.f32 %v717, %v717
      %v851 = vmul.f32 %v721, %v721
      %v852 = vmul.f32 %v723, %v723
      %v853 = vmul.f32 %v727, %v727
      %v854 = vmul.f32 %v729, %v729
      %v855 = vmul.f32 %v733, %v733
      %v856 = vmul.f32 %v735, %v735
      %v857 = vmul.f32 %v739, %v739
      %v858 = vmul.f32 %v741, %v741
      %v859 = vmul.f32 %v745, %v745
      %v860 = vmul.f32 %v747, %v747
      %v861 = vmul.f32 %v751, %v751
      %v862 = vmul.f32 %v753, %v753
      %v863 = vmul.f32 %v757, %v757
      %v864 = vmul.f32 %v759, %v759
      %v865 = vmul.f32 %v763, %v763
      %v866 = vmul.f32 %v765, %v765
      %v867 = vmul.f32 %v769, %v769
      %v868 = vmul.f32 %v771, %v771
      %v869 = vadd.f32 %v837, %v838
      %870 = vadd.xlane.f32.xlu0 %v869
      %v871 = vpop.xlane.xlu0 %870
      %v872 = vadd.f32 %v839, %v840
      %873 = vadd.xlane.f32.xlu0 %v872
      %v874 = vpop.xlane.xlu0 %873
      %v875 = vadd.f32 %v841, %v842
      %876 = vadd.xlane.f32.xlu0 %v875
      %v877 = vpop.xlane.xlu0 %876
      %v878 = vadd.f32 %v843, %v844
      %879 = vadd.xlane.f32.xlu0 %v878
      %v880 = vpop.xlane.xlu0 %879
      %v881 = vadd.f32 %v845, %v846
      %882 = vadd.xlane.f32.xlu0 %v881
      %v883 = vpop.xlane.xlu0 %882
      %v884 = vadd.f32 %v847, %v848
      %885 = vadd.xlane.f32.xlu0 %v884
      %v886 = vpop.xlane.xlu0 %885
      %v887 = vadd.f32 %v849, %v850
      %888 = vadd.xlane.f32.xlu0 %v887
      %v889 = vpop.xlane.xlu0 %888
      %v890 = vadd.f32 %v851, %v852
      %891 = vadd.xlane.f32.xlu0 %v890
      %v892 = vpop.xlane.xlu0 %891
      %v893 = vadd.f32 %v853, %v854
      %894 = vadd.xlane.f32.xlu0 %v893
      %v895 = vpop.xlane.xlu0 %894
      %v896 = vadd.f32 %v855, %v856
      %897 = vadd.xlane.f32.xlu0 %v896
      %v898 = vpop.xlane.xlu0 %897
      %v899 = vadd.f32 %v857, %v858
      %900 = vadd.xlane.f32.xlu0 %v899
      %v901 = vpop.xlane.xlu0 %900
      %v902 = vadd.f32 %v859, %v860
      %903 = vadd.xlane.f32.xlu0 %v902
      %v904 = vpop.xlane.xlu0 %903
      %v905 = vadd.f32 %v861, %v862
      %906 = vadd.xlane.f32.xlu0 %v905
      %v907 = vpop.xlane.xlu0 %906
      %v908 = vadd.f32 %v863, %v864
      %909 = vadd.xlane.f32.xlu0 %v908
      %v910 = vpop.xlane.xlu0 %909
      %v911 = vadd.f32 %v865, %v866
      %912 = vadd.xlane.f32.xlu0 %v911
      %v913 = vpop.xlane.xlu0 %912
      %v914 = vadd.f32 %v867, %v868
      %915 = vadd.xlane.f32.xlu0 %v914
      %v916 = vpop.xlane.xlu0 %915
      %917 = vst.msk [vmem:[%s265] sm:$0xff] %vm329, %v871
      %918 = vst.msk [vmem:[%s265 + $0x8] sm:$0xff] %vm329, %v874
      %919 = vst.msk [vmem:[%s265 + $0x10] sm:$0xff] %vm329, %v877
      %920 = vst.msk [vmem:[%s265 + $0x18] sm:$0xff] %vm329, %v880
      %921 = vst.msk [vmem:[%s265 + $0x20] sm:$0xff] %vm329, %v883
      %922 = vst.msk [vmem:[%s265 + $0x28] sm:$0xff] %vm329, %v886
      %923 = vst.msk [vmem:[%s265 + $0x30] sm:$0xff] %vm329, %v889
      %924 = vst.msk [vmem:[%s265 + $0x38] sm:$0xff] %vm329, %v892
      %925 = vst.msk [vmem:[%s265 + $0x40] sm:$0xff] %vm329, %v895
      %926 = vst.msk [vmem:[%s265 + $0x48] sm:$0xff] %vm329, %v898
      %927 = vst.msk [vmem:[%s265 + $0x50] sm:$0xff] %vm329, %v901
      %928 = vst.msk [vmem:[%s265 + $0x58] sm:$0xff] %vm329, %v904
      %929 = vst.msk [vmem:[%s265 + $0x60] sm:$0xff] %vm329, %v907
      %930 = vst.msk [vmem:[%s265 + $0x68] sm:$0xff] %vm329, %v910
      %931 = vst.msk [vmem:[%s265 + $0x70] sm:$0xff] %vm329, %v913
      %932 = vst.msk [vmem:[%s265 + $0x78] sm:$0xff] %vm329, %v916
      %s933 = smul.u32 16, %s21
      %p934 = scmp.lt.s32.totalorder %s20, 1
      %s935 = scalar_select %p934, %s20, 1
      %p936 = scmp.lt.s32.totalorder %s933, 15
      %s937 = scalar_select %p936, %s933, 15
      %s938 = smul.addr %s935, 16
      %s939 = sadd.s32 %s937, %s938
      %s940 = smul.addr %s939, 8
      %s941 = scalar_lea.vmem %s3, %s940
      %s942 = smul.u32 16, %s21
      %p943 = scmp.lt.s32.totalorder %s20, 1
      %s944 = scalar_select %p943, %s20, 1
      %p945 = scmp.lt.s32.totalorder %s942, 15
      %s946 = scalar_select %p945, %s942, 15
      %s947 = smul.addr %s944, 16
      %s948 = sadd.s32 %s946, %s947
      %s949 = smul.addr %s948, 8
      %s950 = scalar_lea.vmem %s4, %s949
      // Predicated region
      $region33: #{conv_block_forward.2} parent=31 // pred_check
        %p951 = pneg %p121
      $region34: #{conv_block_forward.2} parent=31 // pred_check_branch
        %953 = sbr.rel (%p951) target = $region36
      $region35: #{conv_block_forward.2} parent=31 // pred_region
        %s954 = smul.u32 16, %s21
      $region36: #{conv_block_forward.2} parent=31 // pred_fallthru
        _
      // Predicated region
      $region37: #{conv_block_forward.2} parent=31 // pred_check
        %p955 = pneg %p149
      $region38: #{conv_block_forward.2} parent=31 // pred_check_branch
        %957 = sbr.rel (%p955) target = $region40
      $region39: #{conv_block_forward.2} parent=31 // pred_region
        %s958 = smul.u32 16, %s21
      $region40: #{conv_block_forward.2} parent=31 // pred_fallthru
        _
    $region32: #{conv_block_forward.2} parent=5 // pred_fallthru
      _
    %p959 = scmp.le.s32.totalorder 2, %s11
    // Predicated region
    $region41: #{conv_block_forward.2} parent=5 // pred_check
      %p960 = pneg %p959
    $region42: #{conv_block_forward.2} parent=5 // pred_check_branch
      %962 = sbr.rel (%p960) target = $region44
    $region43: #{conv_block_forward.2} parent=5 // pred_region
      %s963 = ssub.s32 %s11, 2
      // Predicated region
      $region45: #{conv_block_forward.2} parent=43 // pred_check
        %p964 = pneg %p127
      $region46: #{conv_block_forward.2} parent=43 // pred_check_branch
        %966 = sbr.rel (%p964) target = $region48
      $region47: #{conv_block_forward.2} parent=43 // pred_region
        %s967 = smul.u32 16, %s23
        %p968 = scmp.lt.s32.totalorder %s22, 1
        %s969 = scalar_select %p968, %s22, 1
        %p970 = scmp.lt.s32.totalorder %s967, 15
        %s971 = scalar_select %p970, %s967, 15
        %s972 = smul.addr %s969, 16
        %s973 = sadd.s32 %s971, %s972
        %s974 = smul.addr %s973, 8
        %s975 = scalar_lea.vmem %s3, %s974
      $region48: #{conv_block_forward.2} parent=43 // pred_fallthru
        _
      // Predicated region
      $region49: #{conv_block_forward.2} parent=43 // pred_check
        %p976 = pneg %p155
      $region50: #{conv_block_forward.2} parent=43 // pred_check_branch
        %978 = sbr.rel (%p976) target = $region52
      $region51: #{conv_block_forward.2} parent=43 // pred_region
        %s979 = smul.u32 16, %s23
        %p980 = scmp.lt.s32.totalorder %s22, 1
        %s981 = scalar_select %p980, %s22, 1
        %p982 = scmp.lt.s32.totalorder %s979, 15
        %s983 = scalar_select %p982, %s979, 15
        %s984 = smul.addr %s981, 16
        %s985 = sadd.s32 %s983, %s984
        %s986 = smul.addr %s985, 8
        %s987 = scalar_lea.vmem %s4, %s986
      $region52: #{conv_block_forward.2} parent=43 // pred_fallthru
        _
    $region44: #{conv_block_forward.2} parent=5 // pred_fallthru
      _
  $region6: #{conv_block_forward.2} parent=0 // loop_footer
    %s15 = sadd.s32 1, %s11
  $region7: #{conv_block_forward.2} parent=0 // loop_footer_branch
    %10 = sbr.rel target = $region3
  $region8: #{conv_block_forward.2} parent=0 // loop_exit
    _

</llo_original>
